<compile_context>
chip_gen: v7x
topology: tpu7x:2x2x1
jax: 0.10.0
libtpu: 0.0.40
codegen_flags: <defaults>
</compile_context>

<pallas_src>
import jax
import jax.numpy as jnp
from jax import lax
from jax.experimental import pallas as pl
from jax.experimental.pallas import tpu as pltpu

FP = 128   # lane-padded output feature width (multiple of 128)
KP = 32    # contraction-dim padding: real fan-in rounded up to a sublane multiple


# ---------------------------------------------------------------------------
# Single fused kernel: RGCN stack + GAT + SumPool + Dense
# ---------------------------------------------------------------------------
def fused_forward_kernel(h0_ref, acat_ref, cnt_ref, wcat_ref, b_ref,
                         wg_ref, vec_ref, bd_ref, out_ref):
    num_layers = wcat_ref.shape[0]
    num_rels = acat_ref.shape[1] // acat_ref.shape[0]

    a_cat = acat_ref[...]                                        # (N, R*N) bf16
    h = h0_ref[...]                                              # (N, KP)  bf16

    # ---- RelGraphConv stack: 2 fused MXU matmuls per layer (static unroll) ----
    for l in range(num_layers):
        # one matmul yields [self | msg_1 | ... | msg_R] along the lane axis
        zall = jnp.dot(h, wcat_ref[l],
                       preferred_element_type=jnp.float32)       # (N, (R+1)*FP) f32
        self_part = zall[:, :FP] + b_ref[l]                      # (N, FP) f32
        # row-stack per-relation messages so all R neighborhood aggregations
        # become a single (N, R*N) @ (R*N, FP) matmul
        msg_stack = jnp.concatenate(
            [zall[:, FP * (r + 1):FP * (r + 2)] for r in range(num_rels)],
            axis=0).astype(jnp.bfloat16)                         # (R*N, FP) bf16
        agg = jnp.dot(a_cat, msg_stack,
                      preferred_element_type=jnp.float32)        # (N, FP) f32
        h_full = jnp.maximum(self_part + agg, 0.0)               # ReLU
        h = h_full[:, :KP].astype(jnp.bfloat16)                  # real columns only

    # ---- GATConv (1 head) + SumPooling + Linear(out_dim, 1) — f32 path --------
    vec = vec_ref[...]                                           # (8, FP) f32
    al, ar = vec[0:1, :], vec[1:2, :]
    bg, wd = vec[2:3, :], vec[3:4, :]

    z = jnp.dot(h, wg_ref[...], preferred_element_type=jnp.float32)   # (N, FP) f32
    er = jnp.sum(z * ar, axis=-1, keepdims=True)                 # (N, 1)  <z_dst, a_r>
    el_row = lax.dot_general(al, z,
                             dimension_numbers=(((1,), (1,)), ((), ())),
                             preferred_element_type=jnp.float32)  # (1, N)  <z_src, a_l>

    e = er + el_row                                              # e[dst, src]
    e = jnp.where(e >= 0.0, e, 0.2 * e)                          # LeakyReLU(0.2)

    cnt = cnt_ref[...]                                           # edge multiplicity (f32)
    has_edge = cnt > 0.0
    e = jnp.where(has_edge, e, -1e30)
    e_max = jnp.max(e, axis=-1, keepdims=True)
    p = jnp.where(has_edge, cnt * jnp.exp(e - e_max), 0.0)
    denom = jnp.sum(p, axis=-1, keepdims=True)
    denom_safe = jnp.where(denom > 0.0, denom, 1.0)
    alpha = p / denom_safe                                       # exact edge softmax

    gat = jnp.dot(alpha, z, preferred_element_type=jnp.float32) + bg   # (N, FP)
    pooled = jnp.sum(gat, axis=0, keepdims=True)                 # SumPooling (1, FP)
    out_ref[...] = (jnp.sum(pooled * wd, axis=-1, keepdims=True)
                    + bd_ref[...])                               # (1, 1)


def fused_forward(h0, a_cat, cnt, pp):
    vmem = pl.BlockSpec(memory_space=pltpu.MemorySpace.VMEM)
    args = (h0, a_cat, cnt, pp["Wcat"], pp["b"], pp["Wg"], pp["vec"], pp["bd"])
    return pl.pallas_call(
        fused_forward_kernel,
        out_shape=jax.ShapeDtypeStruct((1, 1), jnp.float32),
        in_specs=[vmem] * len(args),
        out_specs=vmem,
    )(*args)


# ---------------------------------------------------------------------------
# Parameter init (reference shapes) + one-time packing / padding / bf16 cast
# ---------------------------------------------------------------------------
def init_params(key, features_dim, h_dim, out_dim, num_rels, num_hidden_layers):
    dims = [features_dim] + [h_dim] * (num_hidden_layers + 1) + [out_dim]
    params = {"rgcn": []}
    for i in range(len(dims) - 1):
        fin, fout = dims[i], dims[i + 1]
        key, k1, k2, k3 = jax.random.split(key, 4)
        params["rgcn"].append({
            "W": 0.1 * jax.random.normal(k1, (num_rels, fin, fout), jnp.float32),
            "W_self": 0.1 * jax.random.normal(k2, (fin, fout), jnp.float32),
            "b": 0.1 * jax.random.normal(k3, (1, fout), jnp.float32),
        })
    key, k1, k2, k3, k4, k5, k6 = jax.random.split(key, 7)
    params["gat"] = {
        "W": 0.1 * jax.random.normal(k1, (out_dim, out_dim), jnp.float32),
        "attn_l": 0.1 * jax.random.normal(k2, (1, out_dim), jnp.float32),
        "attn_r": 0.1 * jax.random.normal(k3, (1, out_dim), jnp.float32),
        "b": 0.1 * jax.random.normal(k4, (1, out_dim), jnp.float32),
    }
    params["dense"] = {
        "W": 0.1 * jax.random.normal(k5, (out_dim, 1), jnp.float32),
        "b": 0.1 * jax.random.normal(k6, (1, 1), jnp.float32),
    }
    return params


def pad_to(x, shape):
    pads = [(0, s - d) for d, s in zip(x.shape, shape)]
    return jnp.pad(x, pads)


def pack_padded_params(params, num_rels):
    # Pad K (fan-in) to KP=32 and outputs to FP=128 (zero padding is exact:
    # padded columns stay zero through every layer), fuse [W_self | W_r...]
    # along the output axis per layer, and cast matmul operands to bf16.
    rg = params["rgcn"]
    wcat_layers = []
    for layer in rg:
        blocks = [pad_to(layer["W_self"], (KP, FP))]
        blocks += [pad_to(layer["W"][r], (KP, FP)) for r in range(num_rels)]
        wcat_layers.append(jnp.concatenate(blocks, axis=1))       # (KP, (R+1)*FP)
    g, d = params["gat"], params["dense"]
    vec = jnp.zeros((8, FP), jnp.float32)                         # packed f32 row vectors
    vec = vec.at[0].set(pad_to(g["attn_l"], (1, FP))[0])
    vec = vec.at[1].set(pad_to(g["attn_r"], (1, FP))[0])
    vec = vec.at[2].set(pad_to(g["b"], (1, FP))[0])
    vec = vec.at[3].set(pad_to(d["W"].T, (1, FP))[0])
    return {
        "Wcat": jnp.stack(wcat_layers).astype(jnp.bfloat16),      # (L, KP, (R+1)*FP)
        "b": jnp.stack([pad_to(layer["b"], (1, FP)) for layer in rg]),  # (L,1,FP) f32
        "Wg": pad_to(g["W"], (KP, FP)).astype(jnp.bfloat16),      # (KP, FP)
        "vec": vec,                                               # rows: al, ar, bg, wd
        "bd": d["b"],                                             # (1, 1) f32
    }


def pack_graph(A):
    # A[r, dst, src] dense per-relation adjacency (edge multiplicity).
    num_rels = A.shape[0]
    a_cat = jnp.concatenate([A[r] for r in range(num_rels)],
                            axis=1).astype(jnp.bfloat16)          # (N, R*N)
    cnt = jnp.sum(A, axis=0)                                      # (N, N) f32
    return a_cat, cnt


def model_forward(packed_params, h0, a_cat, cnt, classifier=False):
    out = fused_forward(h0, a_cat, cnt, packed_params)
    out = out.reshape(1, 1, 1)   # (num_graphs, num_heads, 1) — mirrors dense(SumPool(...))
    if classifier:
        out = jax.nn.sigmoid(out)
    return out


if __name__ == "__main__":
    N, E = 16, 48
    features_dim, h_dim, out_dim = 16, 32, 32
    num_rels, num_hidden_layers = 4, 2
    assert max(features_dim, h_dim, out_dim) <= KP <= FP and out_dim <= FP

    key = jax.random.PRNGKey(0)
    key, kx, ks, kd, ke, kp = jax.random.split(key, 6)

    # node features and a random multigraph with typed edges ("one_hot" = etype id)
    x = jax.random.normal(kx, (N, features_dim), jnp.float32)
    src = jax.random.randint(ks, (E,), 0, N)
    dst = jax.random.randint(kd, (E,), 0, N)
    etype = jax.random.randint(ke, (E,), 0, num_rels)
    A = jnp.zeros((num_rels, N, N), jnp.float32).at[etype, dst, src].add(1.0)

    params = init_params(kp, features_dim, h_dim, out_dim, num_rels, num_hidden_layers)
    packed = pack_padded_params(params, num_rels)
    a_cat, cnt = pack_graph(A)
    h0 = pad_to(x, (N, KP)).astype(jnp.bfloat16)

    out = model_forward(packed, h0, a_cat, cnt, classifier=False)
    jax.block_until_ready(out)
    assert out.shape == (1, 1, 1)
    print("KERNEL_OK")
</pallas_src>

<mosaic_0001>
module attributes {stable_mosaic.version = 11 : i64} {
  func.func @fused_forward_kernel(%arg0: memref<16x32xbf16, #tpu.memory_space<vmem>>, %arg1: memref<16x64xbf16, #tpu.memory_space<vmem>>, %arg2: memref<16x16xf32, #tpu.memory_space<vmem>>, %arg3: memref<4x32x640xbf16, #tpu.memory_space<vmem>>, %arg4: memref<4x1x128xf32, #tpu.memory_space<vmem>>, %arg5: memref<32x128xbf16, #tpu.memory_space<vmem>>, %arg6: memref<8x128xf32, #tpu.memory_space<vmem>>, %arg7: memref<1x1xf32, #tpu.memory_space<vmem>>, %arg8: memref<1x1xf32, #tpu.memory_space<vmem>>) attributes {dimension_semantics = [], scalar_prefetch = 0 : i64, scratch_operands = 0 : i64, tpu.core_type = #tpu.core_type<tc>} {
    %c0 = arith.constant 0 : index
    %c0_0 = arith.constant 0 : index
    %0 = vector.load %arg1[%c0, %c0_0] : memref<16x64xbf16, #tpu.memory_space<vmem>>, vector<16x64xbf16>
    %c0_1 = arith.constant 0 : index
    %c0_2 = arith.constant 0 : index
    %1 = vector.load %arg0[%c0_1, %c0_2] : memref<16x32xbf16, #tpu.memory_space<vmem>>, vector<16x32xbf16>
    %c0_3 = arith.constant 0 : index
    %c0_4 = arith.constant 0 : index
    %c0_5 = arith.constant 0 : index
    %2 = vector.load %arg3[%c0_3, %c0_4, %c0_5] : memref<4x32x640xbf16, #tpu.memory_space<vmem>>, vector<1x32x640xbf16>
    %3 = vector.shape_cast %2 : vector<1x32x640xbf16> to vector<32x640xbf16>
    %cst = arith.constant dense<0.000000e+00> : vector<16x640xf32>
    %4 = tpu.matmul %1, %3, %cst {dimension_numbers = #tpu.dot_dimension_numbers<[1], [0], [0], [1], [0, 0, 1, 1], [], []>} : vector<16x32xbf16>, vector<32x640xbf16>, vector<16x640xf32> -> vector<16x640xf32>
    %5 = vector.extract_strided_slice %4 {offsets = [0, 0], sizes = [16, 128], strides = [1, 1]} : vector<16x640xf32> to vector<16x128xf32>
    %c0_6 = arith.constant 0 : index
    %c0_7 = arith.constant 0 : index
    %c0_8 = arith.constant 0 : index
    %6 = vector.load %arg4[%c0_6, %c0_7, %c0_8] : memref<4x1x128xf32, #tpu.memory_space<vmem>>, vector<1x1x128xf32>
    %7 = vector.shape_cast %6 : vector<1x1x128xf32> to vector<1x128xf32>
    %8 = vector.broadcast %7 : vector<1x128xf32> to vector<16x128xf32>
    %9 = arith.addf %5, %8 : vector<16x128xf32>
    %10 = vector.extract_strided_slice %4 {offsets = [0, 128], sizes = [16, 128], strides = [1, 1]} : vector<16x640xf32> to vector<16x128xf32>
    %11 = vector.extract_strided_slice %4 {offsets = [0, 256], sizes = [16, 128], strides = [1, 1]} : vector<16x640xf32> to vector<16x128xf32>
    %12 = vector.extract_strided_slice %4 {offsets = [0, 384], sizes = [16, 128], strides = [1, 1]} : vector<16x640xf32> to vector<16x128xf32>
    %13 = vector.extract_strided_slice %4 {offsets = [0, 512], sizes = [16, 128], strides = [1, 1]} : vector<16x640xf32> to vector<16x128xf32>
    %14 = tpu.concatenate %10, %11, %12, %13 in 0 : vector<16x128xf32>, vector<16x128xf32>, vector<16x128xf32>, vector<16x128xf32> -> vector<64x128xf32>
    %15 = arith.truncf %14 : vector<64x128xf32> to vector<64x128xbf16>
    %cst_9 = arith.constant dense<0.000000e+00> : vector<16x128xf32>
    %16 = tpu.matmul %0, %15, %cst_9 {dimension_numbers = #tpu.dot_dimension_numbers<[1], [0], [0], [1], [0, 0, 1, 1], [], []>} : vector<16x64xbf16>, vector<64x128xbf16>, vector<16x128xf32> -> vector<16x128xf32>
    %17 = arith.addf %9, %16 : vector<16x128xf32>
    %cst_10 = arith.constant 0.000000e+00 : f32
    %18 = vector.broadcast %cst_10 : f32 to vector<16x128xf32>
    %19 = arith.maximumf %17, %18 : vector<16x128xf32>
    %20 = vector.extract_strided_slice %19 {offsets = [0, 0], sizes = [16, 32], strides = [1, 1]} : vector<16x128xf32> to vector<16x32xf32>
    %21 = arith.truncf %20 : vector<16x32xf32> to vector<16x32xbf16>
    %c1 = arith.constant 1 : index
    %c0_11 = arith.constant 0 : index
    %c0_12 = arith.constant 0 : index
    %22 = vector.load %arg3[%c1, %c0_11, %c0_12] : memref<4x32x640xbf16, #tpu.memory_space<vmem>>, vector<1x32x640xbf16>
    %23 = vector.shape_cast %22 : vector<1x32x640xbf16> to vector<32x640xbf16>
    %cst_13 = arith.constant dense<0.000000e+00> : vector<16x640xf32>
    %24 = tpu.matmul %21, %23, %cst_13 {dimension_numbers = #tpu.dot_dimension_numbers<[1], [0], [0], [1], [0, 0, 1, 1], [], []>} : vector<16x32xbf16>, vector<32x640xbf16>, vector<16x640xf32> -> vector<16x640xf32>
    %25 = vector.extract_strided_slice %24 {offsets = [0, 0], sizes = [16, 128], strides = [1, 1]} : vector<16x640xf32> to vector<16x128xf32>
    %c1_14 = arith.constant 1 : index
    %c0_15 = arith.constant 0 : index
    %c0_16 = arith.constant 0 : index
    %26 = vector.load %arg4[%c1_14, %c0_15, %c0_16] : memref<4x1x128xf32, #tpu.memory_space<vmem>>, vector<1x1x128xf32>
    %27 = vector.shape_cast %26 : vector<1x1x128xf32> to vector<1x128xf32>
    %28 = vector.broadcast %27 : vector<1x128xf32> to vector<16x128xf32>
    %29 = arith.addf %25, %28 : vector<16x128xf32>
    %30 = vector.extract_strided_slice %24 {offsets = [0, 128], sizes = [16, 128], strides = [1, 1]} : vector<16x640xf32> to vector<16x128xf32>
    %31 = vector.extract_strided_slice %24 {offsets = [0, 256], sizes = [16, 128], strides = [1, 1]} : vector<16x640xf32> to vector<16x128xf32>
    %32 = vector.extract_strided_slice %24 {offsets = [0, 384], sizes = [16, 128], strides = [1, 1]} : vector<16x640xf32> to vector<16x128xf32>
    %33 = vector.extract_strided_slice %24 {offsets = [0, 512], sizes = [16, 128], strides = [1, 1]} : vector<16x640xf32> to vector<16x128xf32>
    %34 = tpu.concatenate %30, %31, %32, %33 in 0 : vector<16x128xf32>, vector<16x128xf32>, vector<16x128xf32>, vector<16x128xf32> -> vector<64x128xf32>
    %35 = arith.truncf %34 : vector<64x128xf32> to vector<64x128xbf16>
    %cst_17 = arith.constant dense<0.000000e+00> : vector<16x128xf32>
    %36 = tpu.matmul %0, %35, %cst_17 {dimension_numbers = #tpu.dot_dimension_numbers<[1], [0], [0], [1], [0, 0, 1, 1], [], []>} : vector<16x64xbf16>, vector<64x128xbf16>, vector<16x128xf32> -> vector<16x128xf32>
    %37 = arith.addf %29, %36 : vector<16x128xf32>
    %cst_18 = arith.constant 0.000000e+00 : f32
    %38 = vector.broadcast %cst_18 : f32 to vector<16x128xf32>
    %39 = arith.maximumf %37, %38 : vector<16x128xf32>
    %40 = vector.extract_strided_slice %39 {offsets = [0, 0], sizes = [16, 32], strides = [1, 1]} : vector<16x128xf32> to vector<16x32xf32>
    %41 = arith.truncf %40 : vector<16x32xf32> to vector<16x32xbf16>
    %c2 = arith.constant 2 : index
    %c0_19 = arith.constant 0 : index
    %c0_20 = arith.constant 0 : index
    %42 = vector.load %arg3[%c2, %c0_19, %c0_20] : memref<4x32x640xbf16, #tpu.memory_space<vmem>>, vector<1x32x640xbf16>
    %43 = vector.shape_cast %42 : vector<1x32x640xbf16> to vector<32x640xbf16>
    %cst_21 = arith.constant dense<0.000000e+00> : vector<16x640xf32>
    %44 = tpu.matmul %41, %43, %cst_21 {dimension_numbers = #tpu.dot_dimension_numbers<[1], [0], [0], [1], [0, 0, 1, 1], [], []>} : vector<16x32xbf16>, vector<32x640xbf16>, vector<16x640xf32> -> vector<16x640xf32>
    %45 = vector.extract_strided_slice %44 {offsets = [0, 0], sizes = [16, 128], strides = [1, 1]} : vector<16x640xf32> to vector<16x128xf32>
    %c2_22 = arith.constant 2 : index
    %c0_23 = arith.constant 0 : index
    %c0_24 = arith.constant 0 : index
    %46 = vector.load %arg4[%c2_22, %c0_23, %c0_24] : memref<4x1x128xf32, #tpu.memory_space<vmem>>, vector<1x1x128xf32>
    %47 = vector.shape_cast %46 : vector<1x1x128xf32> to vector<1x128xf32>
    %48 = vector.broadcast %47 : vector<1x128xf32> to vector<16x128xf32>
    %49 = arith.addf %45, %48 : vector<16x128xf32>
    %50 = vector.extract_strided_slice %44 {offsets = [0, 128], sizes = [16, 128], strides = [1, 1]} : vector<16x640xf32> to vector<16x128xf32>
    %51 = vector.extract_strided_slice %44 {offsets = [0, 256], sizes = [16, 128], strides = [1, 1]} : vector<16x640xf32> to vector<16x128xf32>
    %52 = vector.extract_strided_slice %44 {offsets = [0, 384], sizes = [16, 128], strides = [1, 1]} : vector<16x640xf32> to vector<16x128xf32>
    %53 = vector.extract_strided_slice %44 {offsets = [0, 512], sizes = [16, 128], strides = [1, 1]} : vector<16x640xf32> to vector<16x128xf32>
    %54 = tpu.concatenate %50, %51, %52, %53 in 0 : vector<16x128xf32>, vector<16x128xf32>, vector<16x128xf32>, vector<16x128xf32> -> vector<64x128xf32>
    %55 = arith.truncf %54 : vector<64x128xf32> to vector<64x128xbf16>
    %cst_25 = arith.constant dense<0.000000e+00> : vector<16x128xf32>
    %56 = tpu.matmul %0, %55, %cst_25 {dimension_numbers = #tpu.dot_dimension_numbers<[1], [0], [0], [1], [0, 0, 1, 1], [], []>} : vector<16x64xbf16>, vector<64x128xbf16>, vector<16x128xf32> -> vector<16x128xf32>
    %57 = arith.addf %49, %56 : vector<16x128xf32>
    %cst_26 = arith.constant 0.000000e+00 : f32
    %58 = vector.broadcast %cst_26 : f32 to vector<16x128xf32>
    %59 = arith.maximumf %57, %58 : vector<16x128xf32>
    %60 = vector.extract_strided_slice %59 {offsets = [0, 0], sizes = [16, 32], strides = [1, 1]} : vector<16x128xf32> to vector<16x32xf32>
    %61 = arith.truncf %60 : vector<16x32xf32> to vector<16x32xbf16>
    %c3 = arith.constant 3 : index
    %c0_27 = arith.constant 0 : index
    %c0_28 = arith.constant 0 : index
    %62 = vector.load %arg3[%c3, %c0_27, %c0_28] : memref<4x32x640xbf16, #tpu.memory_space<vmem>>, vector<1x32x640xbf16>
    %63 = vector.shape_cast %62 : vector<1x32x640xbf16> to vector<32x640xbf16>
    %cst_29 = arith.constant dense<0.000000e+00> : vector<16x640xf32>
    %64 = tpu.matmul %61, %63, %cst_29 {dimension_numbers = #tpu.dot_dimension_numbers<[1], [0], [0], [1], [0, 0, 1, 1], [], []>} : vector<16x32xbf16>, vector<32x640xbf16>, vector<16x640xf32> -> vector<16x640xf32>
    %65 = vector.extract_strided_slice %64 {offsets = [0, 0], sizes = [16, 128], strides = [1, 1]} : vector<16x640xf32> to vector<16x128xf32>
    %c3_30 = arith.constant 3 : index
    %c0_31 = arith.constant 0 : index
    %c0_32 = arith.constant 0 : index
    %66 = vector.load %arg4[%c3_30, %c0_31, %c0_32] : memref<4x1x128xf32, #tpu.memory_space<vmem>>, vector<1x1x128xf32>
    %67 = vector.shape_cast %66 : vector<1x1x128xf32> to vector<1x128xf32>
    %68 = vector.broadcast %67 : vector<1x128xf32> to vector<16x128xf32>
    %69 = arith.addf %65, %68 : vector<16x128xf32>
    %70 = vector.extract_strided_slice %64 {offsets = [0, 128], sizes = [16, 128], strides = [1, 1]} : vector<16x640xf32> to vector<16x128xf32>
    %71 = vector.extract_strided_slice %64 {offsets = [0, 256], sizes = [16, 128], strides = [1, 1]} : vector<16x640xf32> to vector<16x128xf32>
    %72 = vector.extract_strided_slice %64 {offsets = [0, 384], sizes = [16, 128], strides = [1, 1]} : vector<16x640xf32> to vector<16x128xf32>
    %73 = vector.extract_strided_slice %64 {offsets = [0, 512], sizes = [16, 128], strides = [1, 1]} : vector<16x640xf32> to vector<16x128xf32>
    %74 = tpu.concatenate %70, %71, %72, %73 in 0 : vector<16x128xf32>, vector<16x128xf32>, vector<16x128xf32>, vector<16x128xf32> -> vector<64x128xf32>
    %75 = arith.truncf %74 : vector<64x128xf32> to vector<64x128xbf16>
    %cst_33 = arith.constant dense<0.000000e+00> : vector<16x128xf32>
    %76 = tpu.matmul %0, %75, %cst_33 {dimension_numbers = #tpu.dot_dimension_numbers<[1], [0], [0], [1], [0, 0, 1, 1], [], []>} : vector<16x64xbf16>, vector<64x128xbf16>, vector<16x128xf32> -> vector<16x128xf32>
    %77 = arith.addf %69, %76 : vector<16x128xf32>
    %cst_34 = arith.constant 0.000000e+00 : f32
    %78 = vector.broadcast %cst_34 : f32 to vector<16x128xf32>
    %79 = arith.maximumf %77, %78 : vector<16x128xf32>
    %80 = vector.extract_strided_slice %79 {offsets = [0, 0], sizes = [16, 32], strides = [1, 1]} : vector<16x128xf32> to vector<16x32xf32>
    %81 = arith.truncf %80 : vector<16x32xf32> to vector<16x32xbf16>
    %c0_35 = arith.constant 0 : index
    %c0_36 = arith.constant 0 : index
    %82 = vector.load %arg6[%c0_35, %c0_36] : memref<8x128xf32, #tpu.memory_space<vmem>>, vector<8x128xf32>
    %83 = vector.extract_strided_slice %82 {offsets = [0, 0], sizes = [1, 128], strides = [1, 1]} : vector<8x128xf32> to vector<1x128xf32>
    %84 = vector.extract_strided_slice %82 {offsets = [1, 0], sizes = [1, 128], strides = [1, 1]} : vector<8x128xf32> to vector<1x128xf32>
    %85 = vector.extract_strided_slice %82 {offsets = [2, 0], sizes = [1, 128], strides = [1, 1]} : vector<8x128xf32> to vector<1x128xf32>
    %86 = vector.extract_strided_slice %82 {offsets = [3, 0], sizes = [1, 128], strides = [1, 1]} : vector<8x128xf32> to vector<1x128xf32>
    %c0_37 = arith.constant 0 : index
    %c0_38 = arith.constant 0 : index
    %87 = vector.load %arg5[%c0_37, %c0_38] : memref<32x128xbf16, #tpu.memory_space<vmem>>, vector<32x128xbf16>
    %cst_39 = arith.constant dense<0.000000e+00> : vector<16x128xf32>
    %88 = tpu.matmul %81, %87, %cst_39 {dimension_numbers = #tpu.dot_dimension_numbers<[1], [0], [0], [1], [0, 0, 1, 1], [], []>} : vector<16x32xbf16>, vector<32x128xbf16>, vector<16x128xf32> -> vector<16x128xf32>
    %89 = vector.broadcast %84 : vector<1x128xf32> to vector<16x128xf32>
    %90 = arith.mulf %88, %89 : vector<16x128xf32>
    %cst_40 = arith.constant dense<0.000000e+00> : vector<16xf32>
    %91 = vector.multi_reduction <add>, %90, %cst_40 [1] : vector<16x128xf32> to vector<16xf32>
    %92 = vector.shape_cast %91 : vector<16xf32> to vector<16x1xf32>
    %cst_41 = arith.constant dense<0.000000e+00> : vector<1x16xf32>
    %93 = tpu.matmul %83, %88, %cst_41 {dimension_numbers = #tpu.dot_dimension_numbers<[1], [1], [0], [0], [0, 0, 1, 0], [], []>} : vector<1x128xf32>, vector<16x128xf32>, vector<1x16xf32> -> vector<1x16xf32>
    %94 = vector.broadcast %92 : vector<16x1xf32> to vector<16x16xf32>
    %95 = vector.broadcast %93 : vector<1x16xf32> to vector<16x16xf32>
    %96 = arith.addf %94, %95 : vector<16x16xf32>
    %cst_42 = arith.constant 0.000000e+00 : f32
    %97 = vector.broadcast %cst_42 : f32 to vector<16x16xf32>
    %98 = arith.cmpf oge, %96, %97 : vector<16x16xf32>
    %cst_43 = arith.constant 2.000000e-01 : f32
    %99 = vector.broadcast %cst_43 : f32 to vector<16x16xf32>
    %100 = arith.mulf %99, %96 : vector<16x16xf32>
    %101 = arith.select %98, %96, %100 : vector<16x16xi1>, vector<16x16xf32>
    %c0_44 = arith.constant 0 : index
    %c0_45 = arith.constant 0 : index
    %102 = vector.load %arg2[%c0_44, %c0_45] : memref<16x16xf32, #tpu.memory_space<vmem>>, vector<16x16xf32>
    %cst_46 = arith.constant 0.000000e+00 : f32
    %103 = vector.broadcast %cst_46 : f32 to vector<16x16xf32>
    %104 = arith.cmpf ogt, %102, %103 : vector<16x16xf32>
    %cst_47 = arith.constant -1.000000e+30 : f32
    %105 = vector.broadcast %cst_47 : f32 to vector<16x16xf32>
    %106 = arith.select %104, %101, %105 : vector<16x16xi1>, vector<16x16xf32>
    %cst_48 = arith.constant dense<0xFF800000> : vector<16xf32>
    %107 = vector.multi_reduction <maximumf>, %106, %cst_48 [1] : vector<16x16xf32> to vector<16xf32>
    %108 = vector.shape_cast %107 : vector<16xf32> to vector<16x1xf32>
    %109 = vector.broadcast %108 : vector<16x1xf32> to vector<16x16xf32>
    %110 = arith.subf %106, %109 : vector<16x16xf32>
    %111 = math.exp %110 : vector<16x16xf32>
    %112 = arith.mulf %102, %111 : vector<16x16xf32>
    %cst_49 = arith.constant 0.000000e+00 : f32
    %113 = vector.broadcast %cst_49 : f32 to vector<16x16xf32>
    %114 = arith.select %104, %112, %113 : vector<16x16xi1>, vector<16x16xf32>
    %cst_50 = arith.constant dense<0.000000e+00> : vector<16xf32>
    %115 = vector.multi_reduction <add>, %114, %cst_50 [1] : vector<16x16xf32> to vector<16xf32>
    %116 = vector.shape_cast %115 : vector<16xf32> to vector<16x1xf32>
    %cst_51 = arith.constant 0.000000e+00 : f32
    %117 = vector.broadcast %cst_51 : f32 to vector<16x1xf32>
    %118 = arith.cmpf ogt, %116, %117 : vector<16x1xf32>
    %cst_52 = arith.constant 1.000000e+00 : f32
    %119 = vector.broadcast %cst_52 : f32 to vector<16x1xf32>
    %120 = arith.select %118, %116, %119 : vector<16x1xi1>, vector<16x1xf32>
    %121 = vector.broadcast %120 : vector<16x1xf32> to vector<16x16xf32>
    %122 = arith.divf %114, %121 : vector<16x16xf32>
    %cst_53 = arith.constant dense<0.000000e+00> : vector<16x128xf32>
    %123 = tpu.matmul %122, %88, %cst_53 {dimension_numbers = #tpu.dot_dimension_numbers<[1], [0], [0], [1], [0, 0, 1, 1], [], []>} : vector<16x16xf32>, vector<16x128xf32>, vector<16x128xf32> -> vector<16x128xf32>
    %124 = vector.broadcast %85 : vector<1x128xf32> to vector<16x128xf32>
    %125 = arith.addf %123, %124 : vector<16x128xf32>
    %cst_54 = arith.constant dense<0.000000e+00> : vector<128xf32>
    %126 = vector.multi_reduction <add>, %125, %cst_54 [0] : vector<16x128xf32> to vector<128xf32>
    %127 = vector.shape_cast %126 : vector<128xf32> to vector<1x128xf32>
    %128 = arith.mulf %127, %86 : vector<1x128xf32>
    %cst_55 = arith.constant dense<0.000000e+00> : vector<1xf32>
    %129 = vector.multi_reduction <add>, %128, %cst_55 [1] : vector<1x128xf32> to vector<1xf32>
    %130 = vector.shape_cast %129 : vector<1xf32> to vector<1x1xf32>
    %c0_56 = arith.constant 0 : index
    %c0_57 = arith.constant 0 : index
    %131 = vector.load %arg7[%c0_56, %c0_57] : memref<1x1xf32, #tpu.memory_space<vmem>>, vector<1x1xf32>
    %132 = arith.addf %130, %131 : vector<1x1xf32>
    %c0_58 = arith.constant 0 : index
    %c0_59 = arith.constant 0 : index
    %133 = vector.load %arg8[%c0_58, %c0_59] : memref<1x1xf32, #tpu.memory_space<vmem>>, vector<1x1xf32>
    tpu.vector_store %arg8[%c0_58, %c0_59], %132 {strides = array<i32>} : memref<1x1xf32, #tpu.memory_space<vmem>>, vector<1x1xf32>,
    return
  }
}

</mosaic_0001>

<llo_original>
// kernel: tpu_custom_call.1
$region0: #{tpu_custom_call.1}
  #allocation0 [shape = 'u32[]', space=smem, size = 0x4, offset = 0x4, fixed_abs, tag = 'smem constant byte address 0x4 - core index']
  #allocation1 [shape = 'u32[144,128]{1,0:T(1,128)}', space=vmem, size = 0x12000, scoped, tag = 'internal scratch']
  #allocation2 [shape = 'f32[1,1]{1,0:T(1,128)S(1)}', space=vmem, size = 0x200, scoped, tag = 'scoped memory for tpu_custom_call.1']
  %s0 = inlined_call_operand.hbm [shape: bf16[16,32], index: 0, kind: input, shape index: {}]
  %s1 = inlined_call_operand.hbm [shape: bf16[16,64], index: 1, kind: input, shape index: {}]
  %s2 = inlined_call_operand.hbm [shape: f32[16,16], index: 2, kind: input, shape index: {}]
  %s3 = inlined_call_operand.hbm [shape: bf16[4,32,640], index: 3, kind: input, shape index: {}]
  %s4 = inlined_call_operand.hbm [shape: f32[4,1,128], index: 4, kind: input, shape index: {}]
  %s5 = inlined_call_operand.vmem [shape: bf16[32,128], index: 5, kind: input, shape index: {}]
  %s6 = inlined_call_operand.vmem [shape: f32[8,128], index: 6, kind: input, shape index: {}]
  %s7 = inlined_call_operand.<no memory space> [shape: f32[1,1], index: 7, kind: input, shape index: {}]
  %s8 = inlined_call_operand.hbm [shape: f32[1,1], index: 8, kind: output, shape index: {}]
  %s9 = sld [smem:[#allocation0]]
  $region62: #{tpu_custom_call.1} parent=0
    _
  %s11 = ssub.s32 1, %s9
  %s12 = scalar_select 0, %s11, %s9
  %v13 = vstv %s7
  %14 = vst [vmem:[#allocation2] sm:$0x1] %v13
  $region1: #{tpu_custom_call.1} parent=0
    #allocation3 [shape = 'u8[4096]{0}', space=vmem, size = 0x1000, scoped, tag = 'input window, operand 0, single buffered']
    #allocation4 [shape = 's32[1]{0}', space=sflag, size = 0x4, scoped, tag = 'scoped memory for tpu_custom_call.1']
    #allocation5 [shape = 's32[1]{0}', space=sflag, size = 0x4, scoped, tag = 'scoped memory for tpu_custom_call.1']
    #allocation6 [shape = 'u8[4096]{0}', space=vmem, size = 0x1000, scoped, tag = 'input window, operand 1, single buffered']
    #allocation7 [shape = 's32[1]{0}', space=sflag, size = 0x4, scoped, tag = 'scoped memory for tpu_custom_call.1']
    #allocation8 [shape = 'u8[8192]{0}', space=vmem, size = 0x2000, scoped, tag = 'input window, operand 2, single buffered']
    #allocation9 [shape = 'u8[163840]{0}', space=vmem, size = 0x28000, scoped, tag = 'input window, operand 3, single buffered']
    #allocation10 [shape = 's32[1]{0}', space=sflag, size = 0x4, scoped, tag = 'scoped memory for tpu_custom_call.1']
    #allocation11 [shape = 'u8[2048]{0}', space=vmem, size = 0x800, scoped, tag = 'input window, operand 4, single buffered']
    #allocation12 [shape = 'u8[512]{0}', space=vmem, size = 0x400, scoped, tag = 'output window, operand 0, single buffered']
    %15 = vsyncpa [#allocation4], 0
    %16 = vsyncpa [#allocation7], 0
    %17 = vsyncpa [#allocation10], 0
    %18 = vsyncpa [#allocation5], 0
    // Predicated region
    $region2: #{tpu_custom_call.1} parent=1 // pred_check
      _
    $region3: #{tpu_custom_call.1} parent=1 // pred_check_branch
      %20 = sbr.rel (0) target = $region5
    $region4: #{tpu_custom_call.1} parent=1 // pred_region
      %s22 = ssub.s32 128, 128
      %23 = vsyncadd [#allocation4], %s22
      %s24 = sshll.u32 [#allocation3], 4
      %s25 = int_to_ptr.vmem [resolvable:$true] %s24
      %30 = dma.hbm_to_vmem [thread:$0]  %s0, 128, %s25, [#allocation4], 64, 64, 4
    $region5: #{tpu_custom_call.1} parent=1 // pred_fallthru
      _
    // Predicated region
    $region6: #{tpu_custom_call.1} parent=1 // pred_check
      _
    $region7: #{tpu_custom_call.1} parent=1 // pred_check_branch
      %32 = sbr.rel (0) target = $region9
    $region8: #{tpu_custom_call.1} parent=1 // pred_region
      %s34 = ssub.s32 128, 128
      %35 = vsyncadd [#allocation7], %s34
      %s36 = sshll.u32 [#allocation6], 4
      %s37 = int_to_ptr.vmem [resolvable:$true] %s36
      %42 = dma.hbm_to_vmem [thread:$0]  %s1, 128, %s37, [#allocation7], 64, 64, 4
    $region9: #{tpu_custom_call.1} parent=1 // pred_fallthru
      _
    // Predicated region
    $region10: #{tpu_custom_call.1} parent=1 // pred_check
      _
    $region11: #{tpu_custom_call.1} parent=1 // pred_check_branch
      %44 = sbr.rel (0) target = $region13
    $region12: #{tpu_custom_call.1} parent=1 // pred_region
      %s46 = ssub.s32 256, 256
      %47 = vsyncadd [#allocation7], %s46
      %s48 = sshll.u32 [#allocation8], 4
      %s49 = int_to_ptr.vmem [resolvable:$true] %s48
      %54 = dma.hbm_to_vmem [thread:$0]  %s2, 256, %s49, [#allocation7], 128, 128, 8
    $region13: #{tpu_custom_call.1} parent=1 // pred_fallthru
      _
    // Predicated region
    $region14: #{tpu_custom_call.1} parent=1 // pred_check
      _
    $region15: #{tpu_custom_call.1} parent=1 // pred_check_branch
      %56 = sbr.rel (0) target = $region17
    $region16: #{tpu_custom_call.1} parent=1 // pred_region
      %s58 = ssub.s32 5120, 5120
      %59 = vsyncadd [#allocation10], %s58
      %s60 = sshll.u32 [#allocation9], 4
      %s61 = int_to_ptr.vmem [resolvable:$true] %s60
      %66 = dma.hbm_to_vmem [thread:$0]  %s3, 5120, %s61, [#allocation10], 320, 320, 20
    $region17: #{tpu_custom_call.1} parent=1 // pred_fallthru
      _
    // Predicated region
    $region18: #{tpu_custom_call.1} parent=1 // pred_check
      _
    $region19: #{tpu_custom_call.1} parent=1 // pred_check_branch
      %68 = sbr.rel (0) target = $region21
    $region20: #{tpu_custom_call.1} parent=1 // pred_region
      %s70 = ssub.s32 64, 64
      %71 = vsyncadd [#allocation10], %s70
      %s72 = sshll.u32 [#allocation11], 4
      %s73 = int_to_ptr.vmem [resolvable:$true] %s72
      %78 = dma.hbm_to_vmem [thread:$0]  %s4, 64, %s73, [#allocation10], 16, 16, 1
    $region21: #{tpu_custom_call.1} parent=1 // pred_fallthru
      _
    // Predicated region
    $region22: #{tpu_custom_call.1} parent=1 // pred_check
      _
    $region23: #{tpu_custom_call.1} parent=1 // pred_check_branch
      %80 = sbr.rel (0) target = $region25
    $region24: #{tpu_custom_call.1} parent=1 // pred_region
      _
    $region25: #{tpu_custom_call.1} parent=1 // pred_fallthru
      _
    // Predicated region
    $region26: #{tpu_custom_call.1} parent=1 // pred_check
      _
    $region27: #{tpu_custom_call.1} parent=1 // pred_check_branch
      %82 = sbr.rel (0) target = $region29
    $region28: #{tpu_custom_call.1} parent=1 // pred_region
      _
    $region29: #{tpu_custom_call.1} parent=1 // pred_fallthru
      _
    // Predicated region
    $region30: #{tpu_custom_call.1} parent=1 // pred_check
      _
    $region31: #{tpu_custom_call.1} parent=1 // pred_check_branch
      %84 = sbr.rel (0) target = $region33
    $region32: #{tpu_custom_call.1} parent=1 // pred_region
      _
    $region33: #{tpu_custom_call.1} parent=1 // pred_fallthru
      _
    // Predicated region
    $region34: #{tpu_custom_call.1} parent=1 // pred_check
      _
    $region35: #{tpu_custom_call.1} parent=1 // pred_check_branch
      %86 = sbr.rel (0) target = $region37
    $region36: #{tpu_custom_call.1} parent=1 // pred_region
      %87 = dma.done [#allocation4], 128
    $region37: #{tpu_custom_call.1} parent=1 // pred_fallthru
      _
    // Predicated region
    $region38: #{tpu_custom_call.1} parent=1 // pred_check
      _
    $region39: #{tpu_custom_call.1} parent=1 // pred_check_branch
      %89 = sbr.rel (0) target = $region41
    $region40: #{tpu_custom_call.1} parent=1 // pred_region
      %90 = dma.done [#allocation7], 128
    $region41: #{tpu_custom_call.1} parent=1 // pred_fallthru
      _
    // Predicated region
    $region42: #{tpu_custom_call.1} parent=1 // pred_check
      _
    $region43: #{tpu_custom_call.1} parent=1 // pred_check_branch
      %92 = sbr.rel (0) target = $region45
    $region44: #{tpu_custom_call.1} parent=1 // pred_region
      %93 = dma.done [#allocation7], 256
    $region45: #{tpu_custom_call.1} parent=1 // pred_fallthru
      _
    // Predicated region
    $region46: #{tpu_custom_call.1} parent=1 // pred_check
      _
    $region47: #{tpu_custom_call.1} parent=1 // pred_check_branch
      %95 = sbr.rel (0) target = $region49
    $region48: #{tpu_custom_call.1} parent=1 // pred_region
      %96 = dma.done [#allocation10], 5120
    $region49: #{tpu_custom_call.1} parent=1 // pred_fallthru
      _
    // Predicated region
    $region50: #{tpu_custom_call.1} parent=1 // pred_check
      _
    $region51: #{tpu_custom_call.1} parent=1 // pred_check_branch
      %98 = sbr.rel (0) target = $region53
    $region52: #{tpu_custom_call.1} parent=1 // pred_region
      %99 = dma.done [#allocation10], 64
    $region53: #{tpu_custom_call.1} parent=1 // pred_fallthru
      _
    %v101 = vld [vmem:[#allocation6] sm:$0xf]
    %v102 = vld [vmem:[#allocation6 + $0x4] sm:$0xf]
    %v103 = vld [vmem:[#allocation3] sm:$0xf]
    %v104 = vld [vmem:[#allocation3 + $0x4] sm:$0xf]
    %v105 = vld [vmem:[#allocation9] sm:$0xff]
    %v106 = vld [vmem:[#allocation9 + $0x8] sm:$0xff]
    %v107 = vld [vmem:[#allocation9 + $0x10] sm:$0xf]
    %v108 = vld [vmem:[#allocation9 + $0x14] sm:$0xff]
    %v109 = vld [vmem:[#allocation9 + $0x1c] sm:$0xff]
    %v110 = vld [vmem:[#allocation9 + $0x24] sm:$0xf]
    %v111 = vld [vmem:[#allocation9 + $0x28] sm:$0xff]
    %v112 = vld [vmem:[#allocation9 + $0x30] sm:$0xff]
    %v113 = vld [vmem:[#allocation9 + $0x38] sm:$0xf]
    %v114 = vld [vmem:[#allocation9 + $0x3c] sm:$0xff]
    %v115 = vld [vmem:[#allocation9 + $0x44] sm:$0xff]
    %v116 = vld [vmem:[#allocation9 + $0x4c] sm:$0xf]
    %v119 = vunpack.c.l.b16 %v103
    %v120 = vunpack.c.l.b16 %v104
    %v121 = vpack.c.b16 %v120, %v119
    %v134 = vunpack.c.l.b16 %v105
    %v135 = vunpack.c.h.b16 %v105
    %v136 = vunpack.c.l.b16 %v106
    %v137 = vunpack.c.h.b16 %v106
    %v138 = vunpack.c.l.b16 %v107
    %v139 = vunpack.c.l.b16 %v108
    %v140 = vunpack.c.h.b16 %v108
    %v141 = vunpack.c.l.b16 %v109
    %v142 = vunpack.c.h.b16 %v109
    %v143 = vunpack.c.l.b16 %v110
    %v144 = vunpack.c.l.b16 %v111
    %v145 = vunpack.c.h.b16 %v111
    %v146 = vunpack.c.l.b16 %v112
    %v147 = vunpack.c.h.b16 %v112
    %v148 = vunpack.c.l.b16 %v113
    %v149 = vunpack.c.l.b16 %v114
    %v150 = vunpack.c.h.b16 %v114
    %v151 = vunpack.c.l.b16 %v115
    %v152 = vunpack.c.h.b16 %v115
    %v153 = vunpack.c.l.b16 %v116
    %v154 = vpack.c.b16 %v139, %v134
    %v155 = vpack.c.b16 %v140, %v135
    %v156 = vpack.c.b16 %v141, %v136
    %v157 = vpack.c.b16 %v142, %v137
    %v158 = vpack.c.b16 %v143, %v138
    %v159 = vpack.c.b16 %v149, %v144
    %v160 = vpack.c.b16 %v150, %v145
    %v161 = vpack.c.b16 %v151, %v146
    %v162 = vpack.c.b16 %v152, %v147
    %v163 = vpack.c.b16 %v153, %v148
    %vm174 = vcmask 261120
    %v176 = vsel %vm174, %v121, 0
    %178 = vmatprep.subr.bf16.mxu0 %v155
    %179 = vmatpush1.bf16.msra.mxu0 %v154
    %180 = vmatprep.subr.bf16.mxu0 %v160
    %181 = vmatpush1.bf16.msra.mxu0 %v159
    %182 = vmatprep.subr.bf16.mxu0 0
    %183 = vmatpush1.bf16.msra.mxu0 0
    %184 = vmatprep.subr.bf16.mxu0 0
    %185 = vmatpush1.bf16.msra.mxu0 0
    %186 = vmatprep.subr.bf16.mxu0 0
    %187 = vmatpush1.bf16.msra.mxu0 0
    %188 = vmatprep.subr.bf16.mxu0 0
    %189 = vmatpush1.bf16.msra.mxu0 0
    %190 = vmatprep.subr.bf16.mxu0 0
    %191 = vmatpush1.bf16.msra.mxu0 0
    %192 = vmatprep.subr.bf16.mxu0 0
    %193 = vmatpush1.bf16.msra.mxu0 0
    %194 = vmatprep.subr.bf16.mxu0 0
    %195 = vmatpush1.bf16.msra.mxu0 0
    %196 = vmatprep.subr.bf16.mxu0 0
    %197 = vmatpush1.bf16.msra.mxu0 0
    %198 = vmatprep.subr.bf16.mxu0 0
    %199 = vmatpush1.bf16.msra.mxu0 0
    %200 = vmatprep.subr.bf16.mxu0 0
    %201 = vmatpush1.bf16.msra.mxu0 0
    %202 = vmatprep.subr.bf16.mxu0 0
    %203 = vmatpush1.bf16.msra.mxu0 0
    %204 = vmatprep.subr.bf16.mxu0 0
    %205 = vmatpush1.bf16.msra.mxu0 0
    %206 = vmatprep.subr.bf16.mxu0 0
    %207 = vmatpush1.bf16.msra.mxu0 0
    %208 = vmatprep.subr.bf16.mxu0 0
    %209 = vmatpush1.bf16.msra.mxu0 0
    %210 = vmatprep.mubr.bf16.mxu0 0
    %211 = vmatmul.mubr.bf16.gmra.mrb[0].mxu0 %v176
    %v212 = vpop.f32.mrb[0].mxu0
    %v213 = vadd.f32 0.0, %v212
    %v214 = vpop.f32.mrb[0].mxu0
    %v215 = vadd.f32 0.0, %v214
    %v216 = vpop.f32.mrb[0].mxu0
    %v217 = vadd.f32 0.0, %v216
    %v218 = vpop.f32.mrb[0].mxu0
    %v219 = vadd.f32 0.0, %v218
    %220 = vdwg.mxu0
    %221 = vmatprep.subr.bf16.mxu0 %v157
    %222 = vmatpush1.bf16.msra.mxu0 %v156
    %223 = vmatprep.subr.bf16.mxu0 %v162
    %224 = vmatpush1.bf16.msra.mxu0 %v161
    %225 = vmatprep.subr.bf16.mxu0 0
    %226 = vmatpush1.bf16.msra.mxu0 0
    %227 = vmatprep.subr.bf16.mxu0 0
    %228 = vmatpush1.bf16.msra.mxu0 0
    %229 = vmatprep.subr.bf16.mxu0 0
    %230 = vmatpush1.bf16.msra.mxu0 0
    %231 = vmatprep.subr.bf16.mxu0 0
    %232 = vmatpush1.bf16.msra.mxu0 0
    %233 = vmatprep.subr.bf16.mxu0 0
    %234 = vmatpush1.bf16.msra.mxu0 0
    %235 = vmatprep.subr.bf16.mxu0 0
    %236 = vmatpush1.bf16.msra.mxu0 0
    %237 = vmatprep.subr.bf16.mxu0 0
    %238 = vmatpush1.bf16.msra.mxu0 0
    %239 = vmatprep.subr.bf16.mxu0 0
    %240 = vmatpush1.bf16.msra.mxu0 0
    %241 = vmatprep.subr.bf16.mxu0 0
    %242 = vmatpush1.bf16.msra.mxu0 0
    %243 = vmatprep.subr.bf16.mxu0 0
    %244 = vmatpush1.bf16.msra.mxu0 0
    %245 = vmatprep.subr.bf16.mxu0 0
    %246 = vmatpush1.bf16.msra.mxu0 0
    %247 = vmatprep.subr.bf16.mxu0 0
    %248 = vmatpush1.bf16.msra.mxu0 0
    %249 = vmatprep.subr.bf16.mxu0 0
    %250 = vmatpush1.bf16.msra.mxu0 0
    %251 = vmatprep.subr.bf16.mxu0 0
    %252 = vmatpush1.bf16.msra.mxu0 0
    %253 = vmatprep.mubr.bf16.mxu0 0
    %254 = vmatmul.mubr.bf16.gmra.mrb[0].mxu0 %v176
    %v255 = vpop.f32.mrb[0].mxu0
    %v256 = vadd.f32 0.0, %v255
    %v257 = vpop.f32.mrb[0].mxu0
    %v258 = vadd.f32 0.0, %v257
    %v259 = vpop.f32.mrb[0].mxu0
    %v260 = vadd.f32 0.0, %v259
    %v261 = vpop.f32.mrb[0].mxu0
    %v262 = vadd.f32 0.0, %v261
    %263 = vdwg.mxu0
    %264 = vmatprep.subr.bf16.mxu0 0
    %265 = vmatpush1.bf16.msra.mxu0 %v158
    %266 = vmatprep.subr.bf16.mxu0 0
    %267 = vmatpush1.bf16.msra.mxu0 %v163
    %268 = vmatprep.subr.bf16.mxu0 0
    %269 = vmatpush1.bf16.msra.mxu0 0
    %270 = vmatprep.subr.bf16.mxu0 0
    %271 = vmatpush1.bf16.msra.mxu0 0
    %272 = vmatprep.subr.bf16.mxu0 0
    %273 = vmatpush1.bf16.msra.mxu0 0
    %274 = vmatprep.subr.bf16.mxu0 0
    %275 = vmatpush1.bf16.msra.mxu0 0
    %276 = vmatprep.subr.bf16.mxu0 0
    %277 = vmatpush1.bf16.msra.mxu0 0
    %278 = vmatprep.subr.bf16.mxu0 0
    %279 = vmatpush1.bf16.msra.mxu0 0
    %280 = vmatprep.subr.bf16.mxu0 0
    %281 = vmatpush1.bf16.msra.mxu0 0
    %282 = vmatprep.subr.bf16.mxu0 0
    %283 = vmatpush1.bf16.msra.mxu0 0
    %284 = vmatprep.subr.bf16.mxu0 0
    %285 = vmatpush1.bf16.msra.mxu0 0
    %286 = vmatprep.subr.bf16.mxu0 0
    %287 = vmatpush1.bf16.msra.mxu0 0
    %288 = vmatprep.subr.bf16.mxu0 0
    %289 = vmatpush1.bf16.msra.mxu0 0
    %290 = vmatprep.subr.bf16.mxu0 0
    %291 = vmatpush1.bf16.msra.mxu0 0
    %292 = vmatprep.subr.bf16.mxu0 0
    %293 = vmatpush1.bf16.msra.mxu0 0
    %294 = vmatprep.subr.bf16.mxu0 0
    %295 = vmatpush1.bf16.msra.mxu0 0
    %296 = vmatprep.mubr.bf16.mxu0 0
    %297 = vmatmul.mubr.bf16.gmra.mrb[0].mxu0 %v176
    %v298 = vpop.f32.mrb[0].mxu0
    %v299 = vadd.f32 0.0, %v298
    %v300 = vpop.f32.mrb[0].mxu0
    %v301 = vpop.f32.mrb[0].mxu0
    %v302 = vadd.f32 0.0, %v301
    %v303 = vpop.f32.mrb[0].mxu0
    %304 = vdwg.mxu0
    %v305 = vld [vmem:[#allocation11] sm:$0x1]
    %v307 = vlaneseq
    %v308 = vshrl.u32 %v307, 7
    %v309 = vsub.s32 0, %v308
    %v310 = vrot.slane %v305, %v309
    %v312 = vadd.f32 %v213, %v310
    %v313 = vadd.f32 %v217, %v310
    %v314 = vpack.c.bf16 %v219, %v215
    %v315 = vpack.c.bf16 %v260, %v256
    %v316 = vpack.c.bf16 %v262, %v258
    %v317 = vpack.c.bf16 %v302, %v299
    %v320 = vunpack.c.l.b16 %v101
    %v321 = vunpack.c.l.b16 %v102
    %v322 = vpack.c.b16 %v321, %v320
    %vm323 = vcmask 523264
    %v325 = vsel %vm323, %v322, 0
    %327 = vmatprep.subr.bf16.mxu0 0
    %328 = vmatpush1.bf16.msra.mxu0 %v314
    %329 = vmatprep.subr.bf16.mxu0 0
    %330 = vmatpush1.bf16.msra.mxu0 %v315
    %331 = vmatprep.subr.bf16.mxu0 0
    %332 = vmatpush1.bf16.msra.mxu0 %v316
    %333 = vmatprep.subr.bf16.mxu0 0
    %334 = vmatpush1.bf16.msra.mxu0 %v317
    %335 = vmatprep.subr.bf16.mxu0 0
    %336 = vmatpush1.bf16.msra.mxu0 0
    %337 = vmatprep.subr.bf16.mxu0 0
    %338 = vmatpush1.bf16.msra.mxu0 0
    %339 = vmatprep.subr.bf16.mxu0 0
    %340 = vmatpush1.bf16.msra.mxu0 0
    %341 = vmatprep.subr.bf16.mxu0 0
    %342 = vmatpush1.bf16.msra.mxu0 0
    %343 = vmatprep.subr.bf16.mxu0 0
    %344 = vmatpush1.bf16.msra.mxu0 0
    %345 = vmatprep.subr.bf16.mxu0 0
    %346 = vmatpush1.bf16.msra.mxu0 0
    %347 = vmatprep.subr.bf16.mxu0 0
    %348 = vmatpush1.bf16.msra.mxu0 0
    %349 = vmatprep.subr.bf16.mxu0 0
    %350 = vmatpush1.bf16.msra.mxu0 0
    %351 = vmatprep.subr.bf16.mxu0 0
    %352 = vmatpush1.bf16.msra.mxu0 0
    %353 = vmatprep.subr.bf16.mxu0 0
    %354 = vmatpush1.bf16.msra.mxu0 0
    %355 = vmatprep.subr.bf16.mxu0 0
    %356 = vmatpush1.bf16.msra.mxu0 0
    %357 = vmatprep.subr.bf16.mxu0 0
    %358 = vmatpush1.bf16.msra.mxu0 0
    %359 = vmatprep.mubr.bf16.mxu0 0
    %360 = vmatmul.mubr.bf16.gmra.mrb[0].mxu0 %v325
    %v361 = vpop.f32.mrb[0].mxu0
    %v362 = vadd.f32 0.0, %v361
    %v363 = vpop.f32.mrb[0].mxu0
    %v364 = vpop.f32.mrb[0].mxu0
    %v365 = vadd.f32 0.0, %v364
    %v366 = vpop.f32.mrb[0].mxu0
    %367 = vdwg.mxu0
    %v368 = vadd.f32 %v312, %v362
    %v369 = vadd.f32 %v313, %v365
    %v370 = vmax.f32 %v368, 0.0
    %v371 = vmax.f32 %v369, 0.0
    %v372 = vpack.c.bf16 %v371, %v370
    %s373 = scalar_lea.vmem [#allocation9], 80
    %v374 = vld [vmem:[%s373] sm:$0xff]
    %v375 = vld [vmem:[%s373 + $0x8] sm:$0xff]
    %v376 = vld [vmem:[%s373 + $0x10] sm:$0xf]
    %v377 = vld [vmem:[%s373 + $0x14] sm:$0xff]
    %v378 = vld [vmem:[%s373 + $0x1c] sm:$0xff]
    %v379 = vld [vmem:[%s373 + $0x24] sm:$0xf]
    %v380 = vld [vmem:[%s373 + $0x28] sm:$0xff]
    %v381 = vld [vmem:[%s373 + $0x30] sm:$0xff]
    %v382 = vld [vmem:[%s373 + $0x38] sm:$0xf]
    %v383 = vld [vmem:[%s373 + $0x3c] sm:$0xff]
    %v384 = vld [vmem:[%s373 + $0x44] sm:$0xff]
    %v385 = vld [vmem:[%s373 + $0x4c] sm:$0xf]
    %v398 = vunpack.c.l.b16 %v374
    %v399 = vunpack.c.h.b16 %v374
    %v400 = vunpack.c.l.b16 %v375
    %v401 = vunpack.c.h.b16 %v375
    %v402 = vunpack.c.l.b16 %v376
    %v403 = vunpack.c.l.b16 %v377
    %v404 = vunpack.c.h.b16 %v377
    %v405 = vunpack.c.l.b16 %v378
    %v406 = vunpack.c.h.b16 %v378
    %v407 = vunpack.c.l.b16 %v379
    %v408 = vunpack.c.l.b16 %v380
    %v409 = vunpack.c.h.b16 %v380
    %v410 = vunpack.c.l.b16 %v381
    %v411 = vunpack.c.h.b16 %v381
    %v412 = vunpack.c.l.b16 %v382
    %v413 = vunpack.c.l.b16 %v383
    %v414 = vunpack.c.h.b16 %v383
    %v415 = vunpack.c.l.b16 %v384
    %v416 = vunpack.c.h.b16 %v384
    %v417 = vunpack.c.l.b16 %v385
    %v418 = vpack.c.b16 %v403, %v398
    %v419 = vpack.c.b16 %v404, %v399
    %v420 = vpack.c.b16 %v405, %v400
    %v421 = vpack.c.b16 %v406, %v401
    %v422 = vpack.c.b16 %v407, %v402
    %v423 = vpack.c.b16 %v413, %v408
    %v424 = vpack.c.b16 %v414, %v409
    %v425 = vpack.c.b16 %v415, %v410
    %v426 = vpack.c.b16 %v416, %v411
    %v427 = vpack.c.b16 %v417, %v412
    %v439 = vsel %vm174, %v372, 0
    %441 = vmatprep.subr.bf16.mxu0 %v419
    %442 = vmatpush1.bf16.msra.mxu0 %v418
    %443 = vmatprep.subr.bf16.mxu0 %v424
    %444 = vmatpush1.bf16.msra.mxu0 %v423
    %445 = vmatprep.subr.bf16.mxu0 0
    %446 = vmatpush1.bf16.msra.mxu0 0
    %447 = vmatprep.subr.bf16.mxu0 0
    %448 = vmatpush1.bf16.msra.mxu0 0
    %449 = vmatprep.subr.bf16.mxu0 0
    %450 = vmatpush1.bf16.msra.mxu0 0
    %451 = vmatprep.subr.bf16.mxu0 0
    %452 = vmatpush1.bf16.msra.mxu0 0
    %453 = vmatprep.subr.bf16.mxu0 0
    %454 = vmatpush1.bf16.msra.mxu0 0
    %455 = vmatprep.subr.bf16.mxu0 0
    %456 = vmatpush1.bf16.msra.mxu0 0
    %457 = vmatprep.subr.bf16.mxu0 0
    %458 = vmatpush1.bf16.msra.mxu0 0
    %459 = vmatprep.subr.bf16.mxu0 0
    %460 = vmatpush1.bf16.msra.mxu0 0
    %461 = vmatprep.subr.bf16.mxu0 0
    %462 = vmatpush1.bf16.msra.mxu0 0
    %463 = vmatprep.subr.bf16.mxu0 0
    %464 = vmatpush1.bf16.msra.mxu0 0
    %465 = vmatprep.subr.bf16.mxu0 0
    %466 = vmatpush1.bf16.msra.mxu0 0
    %467 = vmatprep.subr.bf16.mxu0 0
    %468 = vmatpush1.bf16.msra.mxu0 0
    %469 = vmatprep.subr.bf16.mxu0 0
    %470 = vmatpush1.bf16.msra.mxu0 0
    %471 = vmatprep.subr.bf16.mxu0 0
    %472 = vmatpush1.bf16.msra.mxu0 0
    %473 = vmatprep.mubr.bf16.mxu0 0
    %474 = vmatmul.mubr.bf16.gmra.mrb[0].mxu0 %v439
    %v475 = vpop.f32.mrb[0].mxu0
    %v476 = vadd.f32 0.0, %v475
    %v477 = vpop.f32.mrb[0].mxu0
    %v478 = vadd.f32 0.0, %v477
    %v479 = vpop.f32.mrb[0].mxu0
    %v480 = vadd.f32 0.0, %v479
    %v481 = vpop.f32.mrb[0].mxu0
    %v482 = vadd.f32 0.0, %v481
    %483 = vdwg.mxu0
    %484 = vmatprep.subr.bf16.mxu0 %v421
    %485 = vmatpush1.bf16.msra.mxu0 %v420
    %486 = vmatprep.subr.bf16.mxu0 %v426
    %487 = vmatpush1.bf16.msra.mxu0 %v425
    %488 = vmatprep.subr.bf16.mxu0 0
    %489 = vmatpush1.bf16.msra.mxu0 0
    %490 = vmatprep.subr.bf16.mxu0 0
    %491 = vmatpush1.bf16.msra.mxu0 0
    %492 = vmatprep.subr.bf16.mxu0 0
    %493 = vmatpush1.bf16.msra.mxu0 0
    %494 = vmatprep.subr.bf16.mxu0 0
    %495 = vmatpush1.bf16.msra.mxu0 0
    %496 = vmatprep.subr.bf16.mxu0 0
    %497 = vmatpush1.bf16.msra.mxu0 0
    %498 = vmatprep.subr.bf16.mxu0 0
    %499 = vmatpush1.bf16.msra.mxu0 0
    %500 = vmatprep.subr.bf16.mxu0 0
    %501 = vmatpush1.bf16.msra.mxu0 0
    %502 = vmatprep.subr.bf16.mxu0 0
    %503 = vmatpush1.bf16.msra.mxu0 0
    %504 = vmatprep.subr.bf16.mxu0 0
    %505 = vmatpush1.bf16.msra.mxu0 0
    %506 = vmatprep.subr.bf16.mxu0 0
    %507 = vmatpush1.bf16.msra.mxu0 0
    %508 = vmatprep.subr.bf16.mxu0 0
    %509 = vmatpush1.bf16.msra.mxu0 0
    %510 = vmatprep.subr.bf16.mxu0 0
    %511 = vmatpush1.bf16.msra.mxu0 0
    %512 = vmatprep.subr.bf16.mxu0 0
    %513 = vmatpush1.bf16.msra.mxu0 0
    %514 = vmatprep.subr.bf16.mxu0 0
    %515 = vmatpush1.bf16.msra.mxu0 0
    %516 = vmatprep.mubr.bf16.mxu0 0
    %517 = vmatmul.mubr.bf16.gmra.mrb[0].mxu0 %v439
    %v518 = vpop.f32.mrb[0].mxu0
    %v519 = vadd.f32 0.0, %v518
    %v520 = vpop.f32.mrb[0].mxu0
    %v521 = vadd.f32 0.0, %v520
    %v522 = vpop.f32.mrb[0].mxu0
    %v523 = vadd.f32 0.0, %v522
    %v524 = vpop.f32.mrb[0].mxu0
    %v525 = vadd.f32 0.0, %v524
    %526 = vdwg.mxu0
    %527 = vmatprep.subr.bf16.mxu0 0
    %528 = vmatpush1.bf16.msra.mxu0 %v422
    %529 = vmatprep.subr.bf16.mxu0 0
    %530 = vmatpush1.bf16.msra.mxu0 %v427
    %531 = vmatprep.subr.bf16.mxu0 0
    %532 = vmatpush1.bf16.msra.mxu0 0
    %533 = vmatprep.subr.bf16.mxu0 0
    %534 = vmatpush1.bf16.msra.mxu0 0
    %535 = vmatprep.subr.bf16.mxu0 0
    %536 = vmatpush1.bf16.msra.mxu0 0
    %537 = vmatprep.subr.bf16.mxu0 0
    %538 = vmatpush1.bf16.msra.mxu0 0
    %539 = vmatprep.subr.bf16.mxu0 0
    %540 = vmatpush1.bf16.msra.mxu0 0
    %541 = vmatprep.subr.bf16.mxu0 0
    %542 = vmatpush1.bf16.msra.mxu0 0
    %543 = vmatprep.subr.bf16.mxu0 0
    %544 = vmatpush1.bf16.msra.mxu0 0
    %545 = vmatprep.subr.bf16.mxu0 0
    %546 = vmatpush1.bf16.msra.mxu0 0
    %547 = vmatprep.subr.bf16.mxu0 0
    %548 = vmatpush1.bf16.msra.mxu0 0
    %549 = vmatprep.subr.bf16.mxu0 0
    %550 = vmatpush1.bf16.msra.mxu0 0
    %551 = vmatprep.subr.bf16.mxu0 0
    %552 = vmatpush1.bf16.msra.mxu0 0
    %553 = vmatprep.subr.bf16.mxu0 0
    %554 = vmatpush1.bf16.msra.mxu0 0
    %555 = vmatprep.subr.bf16.mxu0 0
    %556 = vmatpush1.bf16.msra.mxu0 0
    %557 = vmatprep.subr.bf16.mxu0 0
    %558 = vmatpush1.bf16.msra.mxu0 0
    %559 = vmatprep.mubr.bf16.mxu0 0
    %560 = vmatmul.mubr.bf16.gmra.mrb[0].mxu0 %v439
    %v561 = vpop.f32.mrb[0].mxu0
    %v562 = vadd.f32 0.0, %v561
    %v563 = vpop.f32.mrb[0].mxu0
    %v564 = vpop.f32.mrb[0].mxu0
    %v565 = vadd.f32 0.0, %v564
    %v566 = vpop.f32.mrb[0].mxu0
    %567 = vdwg.mxu0
    %s568 = scalar_lea.vmem [#allocation11], 1
    %v569 = vld [vmem:[%s568] sm:$0x1]
    %v571 = vlaneseq
    %v572 = vshrl.u32 %v571, 7
    %v573 = vsub.s32 0, %v572
    %v574 = vrot.slane %v569, %v573
    %v576 = vadd.f32 %v476, %v574
    %v577 = vadd.f32 %v480, %v574
    %v578 = vpack.c.bf16 %v482, %v478
    %v579 = vpack.c.bf16 %v523, %v519
    %v580 = vpack.c.bf16 %v525, %v521
    %v581 = vpack.c.bf16 %v565, %v562
    %582 = vmatprep.subr.bf16.mxu0 0
    %583 = vmatpush1.bf16.msra.mxu0 %v578
    %584 = vmatprep.subr.bf16.mxu0 0
    %585 = vmatpush1.bf16.msra.mxu0 %v579
    %586 = vmatprep.subr.bf16.mxu0 0
    %587 = vmatpush1.bf16.msra.mxu0 %v580
    %588 = vmatprep.subr.bf16.mxu0 0
    %589 = vmatpush1.bf16.msra.mxu0 %v581
    %590 = vmatprep.subr.bf16.mxu0 0
    %591 = vmatpush1.bf16.msra.mxu0 0
    %592 = vmatprep.subr.bf16.mxu0 0
    %593 = vmatpush1.bf16.msra.mxu0 0
    %594 = vmatprep.subr.bf16.mxu0 0
    %595 = vmatpush1.bf16.msra.mxu0 0
    %596 = vmatprep.subr.bf16.mxu0 0
    %597 = vmatpush1.bf16.msra.mxu0 0
    %598 = vmatprep.subr.bf16.mxu0 0
    %599 = vmatpush1.bf16.msra.mxu0 0
    %600 = vmatprep.subr.bf16.mxu0 0
    %601 = vmatpush1.bf16.msra.mxu0 0
    %602 = vmatprep.subr.bf16.mxu0 0
    %603 = vmatpush1.bf16.msra.mxu0 0
    %604 = vmatprep.subr.bf16.mxu0 0
    %605 = vmatpush1.bf16.msra.mxu0 0
    %606 = vmatprep.subr.bf16.mxu0 0
    %607 = vmatpush1.bf16.msra.mxu0 0
    %608 = vmatprep.subr.bf16.mxu0 0
    %609 = vmatpush1.bf16.msra.mxu0 0
    %610 = vmatprep.subr.bf16.mxu0 0
    %611 = vmatpush1.bf16.msra.mxu0 0
    %612 = vmatprep.subr.bf16.mxu0 0
    %613 = vmatpush1.bf16.msra.mxu0 0
    %614 = vmatprep.mubr.bf16.mxu0 0
    %615 = vmatmul.mubr.bf16.gmra.mrb[0].mxu0 %v325
    %v616 = vpop.f32.mrb[0].mxu0
    %v617 = vadd.f32 0.0, %v616
    %v618 = vpop.f32.mrb[0].mxu0
    %v619 = vpop.f32.mrb[0].mxu0
    %v620 = vadd.f32 0.0, %v619
    %v621 = vpop.f32.mrb[0].mxu0
    %622 = vdwg.mxu0
    %v623 = vadd.f32 %v576, %v617
    %v624 = vadd.f32 %v577, %v620
    %v625 = vmax.f32 %v623, 0.0
    %v626 = vmax.f32 %v624, 0.0
    %v627 = vpack.c.bf16 %v626, %v625
    %s628 = scalar_lea.vmem [#allocation9], 160
    %v629 = vld [vmem:[%s628] sm:$0xff]
    %v630 = vld [vmem:[%s628 + $0x8] sm:$0xff]
    %v631 = vld [vmem:[%s628 + $0x10] sm:$0xf]
    %v632 = vld [vmem:[%s628 + $0x14] sm:$0xff]
    %v633 = vld [vmem:[%s628 + $0x1c] sm:$0xff]
    %v634 = vld [vmem:[%s628 + $0x24] sm:$0xf]
    %v635 = vld [vmem:[%s628 + $0x28] sm:$0xff]
    %v636 = vld [vmem:[%s628 + $0x30] sm:$0xff]
    %v637 = vld [vmem:[%s628 + $0x38] sm:$0xf]
    %v638 = vld [vmem:[%s628 + $0x3c] sm:$0xff]
    %v639 = vld [vmem:[%s628 + $0x44] sm:$0xff]
    %v640 = vld [vmem:[%s628 + $0x4c] sm:$0xf]
    %v653 = vunpack.c.l.b16 %v629
    %v654 = vunpack.c.h.b16 %v629
    %v655 = vunpack.c.l.b16 %v630
    %v656 = vunpack.c.h.b16 %v630
    %v657 = vunpack.c.l.b16 %v631
    %v658 = vunpack.c.l.b16 %v632
    %v659 = vunpack.c.h.b16 %v632
    %v660 = vunpack.c.l.b16 %v633
    %v661 = vunpack.c.h.b16 %v633
    %v662 = vunpack.c.l.b16 %v634
    %v663 = vunpack.c.l.b16 %v635
    %v664 = vunpack.c.h.b16 %v635
    %v665 = vunpack.c.l.b16 %v636
    %v666 = vunpack.c.h.b16 %v636
    %v667 = vunpack.c.l.b16 %v637
    %v668 = vunpack.c.l.b16 %v638
    %v669 = vunpack.c.h.b16 %v638
    %v670 = vunpack.c.l.b16 %v639
    %v671 = vunpack.c.h.b16 %v639
    %v672 = vunpack.c.l.b16 %v640
    %v673 = vpack.c.b16 %v658, %v653
    %v674 = vpack.c.b16 %v659, %v654
    %v675 = vpack.c.b16 %v660, %v655
    %v676 = vpack.c.b16 %v661, %v656
    %v677 = vpack.c.b16 %v662, %v657
    %v678 = vpack.c.b16 %v668, %v663
    %v679 = vpack.c.b16 %v669, %v664
    %v680 = vpack.c.b16 %v670, %v665
    %v681 = vpack.c.b16 %v671, %v666
    %v682 = vpack.c.b16 %v672, %v667
    %v694 = vsel %vm174, %v627, 0
    %696 = vmatprep.subr.bf16.mxu0 %v674
    %697 = vmatpush1.bf16.msra.mxu0 %v673
    %698 = vmatprep.subr.bf16.mxu0 %v679
    %699 = vmatpush1.bf16.msra.mxu0 %v678
    %700 = vmatprep.subr.bf16.mxu0 0
    %701 = vmatpush1.bf16.msra.mxu0 0
    %702 = vmatprep.subr.bf16.mxu0 0
    %703 = vmatpush1.bf16.msra.mxu0 0
    %704 = vmatprep.subr.bf16.mxu0 0
    %705 = vmatpush1.bf16.msra.mxu0 0
    %706 = vmatprep.subr.bf16.mxu0 0
    %707 = vmatpush1.bf16.msra.mxu0 0
    %708 = vmatprep.subr.bf16.mxu0 0
    %709 = vmatpush1.bf16.msra.mxu0 0
    %710 = vmatprep.subr.bf16.mxu0 0
    %711 = vmatpush1.bf16.msra.mxu0 0
    %712 = vmatprep.subr.bf16.mxu0 0
    %713 = vmatpush1.bf16.msra.mxu0 0
    %714 = vmatprep.subr.bf16.mxu0 0
    %715 = vmatpush1.bf16.msra.mxu0 0
    %716 = vmatprep.subr.bf16.mxu0 0
    %717 = vmatpush1.bf16.msra.mxu0 0
    %718 = vmatprep.subr.bf16.mxu0 0
    %719 = vmatpush1.bf16.msra.mxu0 0
    %720 = vmatprep.subr.bf16.mxu0 0
    %721 = vmatpush1.bf16.msra.mxu0 0
    %722 = vmatprep.subr.bf16.mxu0 0
    %723 = vmatpush1.bf16.msra.mxu0 0
    %724 = vmatprep.subr.bf16.mxu0 0
    %725 = vmatpush1.bf16.msra.mxu0 0
    %726 = vmatprep.subr.bf16.mxu0 0
    %727 = vmatpush1.bf16.msra.mxu0 0
    %728 = vmatprep.mubr.bf16.mxu0 0
    %729 = vmatmul.mubr.bf16.gmra.mrb[0].mxu0 %v694
    %v730 = vpop.f32.mrb[0].mxu0
    %v731 = vadd.f32 0.0, %v730
    %v732 = vpop.f32.mrb[0].mxu0
    %v733 = vadd.f32 0.0, %v732
    %v734 = vpop.f32.mrb[0].mxu0
    %v735 = vadd.f32 0.0, %v734
    %v736 = vpop.f32.mrb[0].mxu0
    %v737 = vadd.f32 0.0, %v736
    %738 = vdwg.mxu0
    %739 = vmatprep.subr.bf16.mxu0 %v676
    %740 = vmatpush1.bf16.msra.mxu0 %v675
    %741 = vmatprep.subr.bf16.mxu0 %v681
    %742 = vmatpush1.bf16.msra.mxu0 %v680
    %743 = vmatprep.subr.bf16.mxu0 0
    %744 = vmatpush1.bf16.msra.mxu0 0
    %745 = vmatprep.subr.bf16.mxu0 0
    %746 = vmatpush1.bf16.msra.mxu0 0
    %747 = vmatprep.subr.bf16.mxu0 0
    %748 = vmatpush1.bf16.msra.mxu0 0
    %749 = vmatprep.subr.bf16.mxu0 0
    %750 = vmatpush1.bf16.msra.mxu0 0
    %751 = vmatprep.subr.bf16.mxu0 0
    %752 = vmatpush1.bf16.msra.mxu0 0
    %753 = vmatprep.subr.bf16.mxu0 0
    %754 = vmatpush1.bf16.msra.mxu0 0
    %755 = vmatprep.subr.bf16.mxu0 0
    %756 = vmatpush1.bf16.msra.mxu0 0
    %757 = vmatprep.subr.bf16.mxu0 0
    %758 = vmatpush1.bf16.msra.mxu0 0
    %759 = vmatprep.subr.bf16.mxu0 0
    %760 = vmatpush1.bf16.msra.mxu0 0
    %761 = vmatprep.subr.bf16.mxu0 0
    %762 = vmatpush1.bf16.msra.mxu0 0
    %763 = vmatprep.subr.bf16.mxu0 0
    %764 = vmatpush1.bf16.msra.mxu0 0
    %765 = vmatprep.subr.bf16.mxu0 0
    %766 = vmatpush1.bf16.msra.mxu0 0
    %767 = vmatprep.subr.bf16.mxu0 0
    %768 = vmatpush1.bf16.msra.mxu0 0
    %769 = vmatprep.subr.bf16.mxu0 0
    %770 = vmatpush1.bf16.msra.mxu0 0
    %771 = vmatprep.mubr.bf16.mxu0 0
    %772 = vmatmul.mubr.bf16.gmra.mrb[0].mxu0 %v694
    %v773 = vpop.f32.mrb[0].mxu0
    %v774 = vadd.f32 0.0, %v773
    %v775 = vpop.f32.mrb[0].mxu0
    %v776 = vadd.f32 0.0, %v775
    %v777 = vpop.f32.mrb[0].mxu0
    %v778 = vadd.f32 0.0, %v777
    %v779 = vpop.f32.mrb[0].mxu0
    %v780 = vadd.f32 0.0, %v779
    %781 = vdwg.mxu0
    %782 = vmatprep.subr.bf16.mxu0 0
    %783 = vmatpush1.bf16.msra.mxu0 %v677
    %784 = vmatprep.subr.bf16.mxu0 0
    %785 = vmatpush1.bf16.msra.mxu0 %v682
    %786 = vmatprep.subr.bf16.mxu0 0
    %787 = vmatpush1.bf16.msra.mxu0 0
    %788 = vmatprep.subr.bf16.mxu0 0
    %789 = vmatpush1.bf16.msra.mxu0 0
    %790 = vmatprep.subr.bf16.mxu0 0
    %791 = vmatpush1.bf16.msra.mxu0 0
    %792 = vmatprep.subr.bf16.mxu0 0
    %793 = vmatpush1.bf16.msra.mxu0 0
    %794 = vmatprep.subr.bf16.mxu0 0
    %795 = vmatpush1.bf16.msra.mxu0 0
    %796 = vmatprep.subr.bf16.mxu0 0
    %797 = vmatpush1.bf16.msra.mxu0 0
    %798 = vmatprep.subr.bf16.mxu0 0
    %799 = vmatpush1.bf16.msra.mxu0 0
    %800 = vmatprep.subr.bf16.mxu0 0
    %801 = vmatpush1.bf16.msra.mxu0 0
    %802 = vmatprep.subr.bf16.mxu0 0
    %803 = vmatpush1.bf16.msra.mxu0 0
    %804 = vmatprep.subr.bf16.mxu0 0
    %805 = vmatpush1.bf16.msra.mxu0 0
    %806 = vmatprep.subr.bf16.mxu0 0
    %807 = vmatpush1.bf16.msra.mxu0 0
    %808 = vmatprep.subr.bf16.mxu0 0
    %809 = vmatpush1.bf16.msra.mxu0 0
    %810 = vmatprep.subr.bf16.mxu0 0
    %811 = vmatpush1.bf16.msra.mxu0 0
    %812 = vmatprep.subr.bf16.mxu0 0
    %813 = vmatpush1.bf16.msra.mxu0 0
    %814 = vmatprep.mubr.bf16.mxu0 0
    %815 = vmatmul.mubr.bf16.gmra.mrb[0].mxu0 %v694
    %v816 = vpop.f32.mrb[0].mxu0
    %v817 = vadd.f32 0.0, %v816
    %v818 = vpop.f32.mrb[0].mxu0
    %v819 = vpop.f32.mrb[0].mxu0
    %v820 = vadd.f32 0.0, %v819
    %v821 = vpop.f32.mrb[0].mxu0
    %822 = vdwg.mxu0
    %s823 = scalar_lea.vmem [#allocation11], 2
    %v824 = vld [vmem:[%s823] sm:$0x1]
    %v826 = vlaneseq
    %v827 = vshrl.u32 %v826, 7
    %v828 = vsub.s32 0, %v827
    %v829 = vrot.slane %v824, %v828
    %v831 = vadd.f32 %v731, %v829
    %v832 = vadd.f32 %v735, %v829
    %v833 = vpack.c.bf16 %v737, %v733
    %v834 = vpack.c.bf16 %v778, %v774
    %v835 = vpack.c.bf16 %v780, %v776
    %v836 = vpack.c.bf16 %v820, %v817
    %837 = vmatprep.subr.bf16.mxu0 0
    %838 = vmatpush1.bf16.msra.mxu0 %v833
    %839 = vmatprep.subr.bf16.mxu0 0
    %840 = vmatpush1.bf16.msra.mxu0 %v834
    %841 = vmatprep.subr.bf16.mxu0 0
    %842 = vmatpush1.bf16.msra.mxu0 %v835
    %843 = vmatprep.subr.bf16.mxu0 0
    %844 = vmatpush1.bf16.msra.mxu0 %v836
    %845 = vmatprep.subr.bf16.mxu0 0
    %846 = vmatpush1.bf16.msra.mxu0 0
    %847 = vmatprep.subr.bf16.mxu0 0
    %848 = vmatpush1.bf16.msra.mxu0 0
    %849 = vmatprep.subr.bf16.mxu0 0
    %850 = vmatpush1.bf16.msra.mxu0 0
    %851 = vmatprep.subr.bf16.mxu0 0
    %852 = vmatpush1.bf16.msra.mxu0 0
    %853 = vmatprep.subr.bf16.mxu0 0
    %854 = vmatpush1.bf16.msra.mxu0 0
    %855 = vmatprep.subr.bf16.mxu0 0
    %856 = vmatpush1.bf16.msra.mxu0 0
    %857 = vmatprep.subr.bf16.mxu0 0
    %858 = vmatpush1.bf16.msra.mxu0 0
    %859 = vmatprep.subr.bf16.mxu0 0
    %860 = vmatpush1.bf16.msra.mxu0 0
    %861 = vmatprep.subr.bf16.mxu0 0
    %862 = vmatpush1.bf16.msra.mxu0 0
    %863 = vmatprep.subr.bf16.mxu0 0
    %864 = vmatpush1.bf16.msra.mxu0 0
    %865 = vmatprep.subr.bf16.mxu0 0
    %866 = vmatpush1.bf16.msra.mxu0 0
    %867 = vmatprep.subr.bf16.mxu0 0
    %868 = vmatpush1.bf16.msra.mxu0 0
    %869 = vmatprep.mubr.bf16.mxu0 0
    %870 = vmatmul.mubr.bf16.gmra.mrb[0].mxu0 %v325
    %v871 = vpop.f32.mrb[0].mxu0
    %v872 = vadd.f32 0.0, %v871
    %v873 = vpop.f32.mrb[0].mxu0
    %v874 = vpop.f32.mrb[0].mxu0
    %v875 = vadd.f32 0.0, %v874
    %v876 = vpop.f32.mrb[0].mxu0
    %877 = vdwg.mxu0
    %v878 = vadd.f32 %v831, %v872
    %v879 = vadd.f32 %v832, %v875
    %v880 = vmax.f32 %v878, 0.0
    %v881 = vmax.f32 %v879, 0.0
    %v882 = vpack.c.bf16 %v881, %v880
    %s883 = scalar_lea.vmem [#allocation9], 240
    %v884 = vld [vmem:[%s883] sm:$0xff]
    %v885 = vld [vmem:[%s883 + $0x8] sm:$0xff]
    %v886 = vld [vmem:[%s883 + $0x10] sm:$0xf]
    %v887 = vld [vmem:[%s883 + $0x14] sm:$0xff]
    %v888 = vld [vmem:[%s883 + $0x1c] sm:$0xff]
    %v889 = vld [vmem:[%s883 + $0x24] sm:$0xf]
    %v890 = vld [vmem:[%s883 + $0x28] sm:$0xff]
    %v891 = vld [vmem:[%s883 + $0x30] sm:$0xff]
    %v892 = vld [vmem:[%s883 + $0x38] sm:$0xf]
    %v893 = vld [vmem:[%s883 + $0x3c] sm:$0xff]
    %v894 = vld [vmem:[%s883 + $0x44] sm:$0xff]
    %v895 = vld [vmem:[%s883 + $0x4c] sm:$0xf]
    %v908 = vunpack.c.l.b16 %v884
    %v909 = vunpack.c.h.b16 %v884
    %v910 = vunpack.c.l.b16 %v885
    %v911 = vunpack.c.h.b16 %v885
    %v912 = vunpack.c.l.b16 %v886
    %v913 = vunpack.c.l.b16 %v887
    %v914 = vunpack.c.h.b16 %v887
    %v915 = vunpack.c.l.b16 %v888
    %v916 = vunpack.c.h.b16 %v888
    %v917 = vunpack.c.l.b16 %v889
    %v918 = vunpack.c.l.b16 %v890
    %v919 = vunpack.c.h.b16 %v890
    %v920 = vunpack.c.l.b16 %v891
    %v921 = vunpack.c.h.b16 %v891
    %v922 = vunpack.c.l.b16 %v892
    %v923 = vunpack.c.l.b16 %v893
    %v924 = vunpack.c.h.b16 %v893
    %v925 = vunpack.c.l.b16 %v894
    %v926 = vunpack.c.h.b16 %v894
    %v927 = vunpack.c.l.b16 %v895
    %v928 = vpack.c.b16 %v913, %v908
    %v929 = vpack.c.b16 %v914, %v909
    %v930 = vpack.c.b16 %v915, %v910
    %v931 = vpack.c.b16 %v916, %v911
    %v932 = vpack.c.b16 %v917, %v912
    %v933 = vpack.c.b16 %v923, %v918
    %v934 = vpack.c.b16 %v924, %v919
    %v935 = vpack.c.b16 %v925, %v920
    %v936 = vpack.c.b16 %v926, %v921
    %v937 = vpack.c.b16 %v927, %v922
    %v949 = vsel %vm174, %v882, 0
    %951 = vmatprep.subr.bf16.mxu0 %v929
    %952 = vmatpush1.bf16.msra.mxu0 %v928
    %953 = vmatprep.subr.bf16.mxu0 %v934
    %954 = vmatpush1.bf16.msra.mxu0 %v933
    %955 = vmatprep.subr.bf16.mxu0 0
    %956 = vmatpush1.bf16.msra.mxu0 0
    %957 = vmatprep.subr.bf16.mxu0 0
    %958 = vmatpush1.bf16.msra.mxu0 0
    %959 = vmatprep.subr.bf16.mxu0 0
    %960 = vmatpush1.bf16.msra.mxu0 0
    %961 = vmatprep.subr.bf16.mxu0 0
    %962 = vmatpush1.bf16.msra.mxu0 0
    %963 = vmatprep.subr.bf16.mxu0 0
    %964 = vmatpush1.bf16.msra.mxu0 0
    %965 = vmatprep.subr.bf16.mxu0 0
    %966 = vmatpush1.bf16.msra.mxu0 0
    %967 = vmatprep.subr.bf16.mxu0 0
    %968 = vmatpush1.bf16.msra.mxu0 0
    %969 = vmatprep.subr.bf16.mxu0 0
    %970 = vmatpush1.bf16.msra.mxu0 0
    %971 = vmatprep.subr.bf16.mxu0 0
    %972 = vmatpush1.bf16.msra.mxu0 0
    %973 = vmatprep.subr.bf16.mxu0 0
    %974 = vmatpush1.bf16.msra.mxu0 0
    %975 = vmatprep.subr.bf16.mxu0 0
    %976 = vmatpush1.bf16.msra.mxu0 0
    %977 = vmatprep.subr.bf16.mxu0 0
    %978 = vmatpush1.bf16.msra.mxu0 0
    %979 = vmatprep.subr.bf16.mxu0 0
    %980 = vmatpush1.bf16.msra.mxu0 0
    %981 = vmatprep.subr.bf16.mxu0 0
    %982 = vmatpush1.bf16.msra.mxu0 0
    %983 = vmatprep.mubr.bf16.mxu0 0
    %984 = vmatmul.mubr.bf16.gmra.mrb[0].mxu0 %v949
    %v985 = vpop.f32.mrb[0].mxu0
    %v986 = vadd.f32 0.0, %v985
    %v987 = vpop.f32.mrb[0].mxu0
    %v988 = vadd.f32 0.0, %v987
    %v989 = vpop.f32.mrb[0].mxu0
    %v990 = vadd.f32 0.0, %v989
    %v991 = vpop.f32.mrb[0].mxu0
    %v992 = vadd.f32 0.0, %v991
    %993 = vdwg.mxu0
    %994 = vmatprep.subr.bf16.mxu0 %v931
    %995 = vmatpush1.bf16.msra.mxu0 %v930
    %996 = vmatprep.subr.bf16.mxu0 %v936
    %997 = vmatpush1.bf16.msra.mxu0 %v935
    %998 = vmatprep.subr.bf16.mxu0 0
    %999 = vmatpush1.bf16.msra.mxu0 0
    %1000 = vmatprep.subr.bf16.mxu0 0
    %1001 = vmatpush1.bf16.msra.mxu0 0
    %1002 = vmatprep.subr.bf16.mxu0 0
    %1003 = vmatpush1.bf16.msra.mxu0 0
    %1004 = vmatprep.subr.bf16.mxu0 0
    %1005 = vmatpush1.bf16.msra.mxu0 0
    %1006 = vmatprep.subr.bf16.mxu0 0
    %1007 = vmatpush1.bf16.msra.mxu0 0
    %1008 = vmatprep.subr.bf16.mxu0 0
    %1009 = vmatpush1.bf16.msra.mxu0 0
    %1010 = vmatprep.subr.bf16.mxu0 0
    %1011 = vmatpush1.bf16.msra.mxu0 0
    %1012 = vmatprep.subr.bf16.mxu0 0
    %1013 = vmatpush1.bf16.msra.mxu0 0
    %1014 = vmatprep.subr.bf16.mxu0 0
    %1015 = vmatpush1.bf16.msra.mxu0 0
    %1016 = vmatprep.subr.bf16.mxu0 0
    %1017 = vmatpush1.bf16.msra.mxu0 0
    %1018 = vmatprep.subr.bf16.mxu0 0
    %1019 = vmatpush1.bf16.msra.mxu0 0
    %1020 = vmatprep.subr.bf16.mxu0 0
    %1021 = vmatpush1.bf16.msra.mxu0 0
    %1022 = vmatprep.subr.bf16.mxu0 0
    %1023 = vmatpush1.bf16.msra.mxu0 0
    %1024 = vmatprep.subr.bf16.mxu0 0
    %1025 = vmatpush1.bf16.msra.mxu0 0
    %1026 = vmatprep.mubr.bf16.mxu0 0
    %1027 = vmatmul.mubr.bf16.gmra.mrb[0].mxu0 %v949
    %v1028 = vpop.f32.mrb[0].mxu0
    %v1029 = vadd.f32 0.0, %v1028
    %v1030 = vpop.f32.mrb[0].mxu0
    %v1031 = vadd.f32 0.0, %v1030
    %v1032 = vpop.f32.mrb[0].mxu0
    %v1033 = vadd.f32 0.0, %v1032
    %v1034 = vpop.f32.mrb[0].mxu0
    %v1035 = vadd.f32 0.0, %v1034
    %1036 = vdwg.mxu0
    %1037 = vmatprep.subr.bf16.mxu0 0
    %1038 = vmatpush1.bf16.msra.mxu0 %v932
    %1039 = vmatprep.subr.bf16.mxu0 0
    %1040 = vmatpush1.bf16.msra.mxu0 %v937
    %1041 = vmatprep.subr.bf16.mxu0 0
    %1042 = vmatpush1.bf16.msra.mxu0 0
    %1043 = vmatprep.subr.bf16.mxu0 0
    %1044 = vmatpush1.bf16.msra.mxu0 0
    %1045 = vmatprep.subr.bf16.mxu0 0
    %1046 = vmatpush1.bf16.msra.mxu0 0
    %1047 = vmatprep.subr.bf16.mxu0 0
    %1048 = vmatpush1.bf16.msra.mxu0 0
    %1049 = vmatprep.subr.bf16.mxu0 0
    %1050 = vmatpush1.bf16.msra.mxu0 0
    %1051 = vmatprep.subr.bf16.mxu0 0
    %1052 = vmatpush1.bf16.msra.mxu0 0
    %1053 = vmatprep.subr.bf16.mxu0 0
    %1054 = vmatpush1.bf16.msra.mxu0 0
    %1055 = vmatprep.subr.bf16.mxu0 0
    %1056 = vmatpush1.bf16.msra.mxu0 0
    %1057 = vmatprep.subr.bf16.mxu0 0
    %1058 = vmatpush1.bf16.msra.mxu0 0
    %1059 = vmatprep.subr.bf16.mxu0 0
    %1060 = vmatpush1.bf16.msra.mxu0 0
    %1061 = vmatprep.subr.bf16.mxu0 0
    %1062 = vmatpush1.bf16.msra.mxu0 0
    %1063 = vmatprep.subr.bf16.mxu0 0
    %1064 = vmatpush1.bf16.msra.mxu0 0
    %1065 = vmatprep.subr.bf16.mxu0 0
    %1066 = vmatpush1.bf16.msra.mxu0 0
    %1067 = vmatprep.subr.bf16.mxu0 0
    %1068 = vmatpush1.bf16.msra.mxu0 0
    %1069 = vmatprep.mubr.bf16.mxu0 0
    %1070 = vmatmul.mubr.bf16.gmra.mrb[0].mxu0 %v949
    %v1071 = vpop.f32.mrb[0].mxu0
    %v1072 = vadd.f32 0.0, %v1071
    %v1073 = vpop.f32.mrb[0].mxu0
    %v1074 = vpop.f32.mrb[0].mxu0
    %v1075 = vadd.f32 0.0, %v1074
    %v1076 = vpop.f32.mrb[0].mxu0
    %1077 = vdwg.mxu0
    %s1078 = scalar_lea.vmem [#allocation11], 3
    %v1079 = vld [vmem:[%s1078] sm:$0x1]
    %v1081 = vlaneseq
    %v1082 = vshrl.u32 %v1081, 7
    %v1083 = vsub.s32 0, %v1082
    %v1084 = vrot.slane %v1079, %v1083
    %v1086 = vadd.f32 %v986, %v1084
    %v1087 = vadd.f32 %v990, %v1084
    %v1088 = vpack.c.bf16 %v992, %v988
    %v1089 = vpack.c.bf16 %v1033, %v1029
    %v1090 = vpack.c.bf16 %v1035, %v1031
    %v1091 = vpack.c.bf16 %v1075, %v1072
    %1092 = vmatprep.subr.bf16.mxu0 0
    %1093 = vmatpush1.bf16.msra.mxu0 %v1088
    %1094 = vmatprep.subr.bf16.mxu0 0
    %1095 = vmatpush1.bf16.msra.mxu0 %v1089
    %1096 = vmatprep.subr.bf16.mxu0 0
    %1097 = vmatpush1.bf16.msra.mxu0 %v1090
    %1098 = vmatprep.subr.bf16.mxu0 0
    %1099 = vmatpush1.bf16.msra.mxu0 %v1091
    %1100 = vmatprep.subr.bf16.mxu0 0
    %1101 = vmatpush1.bf16.msra.mxu0 0
    %1102 = vmatprep.subr.bf16.mxu0 0
    %1103 = vmatpush1.bf16.msra.mxu0 0
    %1104 = vmatprep.subr.bf16.mxu0 0
    %1105 = vmatpush1.bf16.msra.mxu0 0
    %1106 = vmatprep.subr.bf16.mxu0 0
    %1107 = vmatpush1.bf16.msra.mxu0 0
    %1108 = vmatprep.subr.bf16.mxu0 0
    %1109 = vmatpush1.bf16.msra.mxu0 0
    %1110 = vmatprep.subr.bf16.mxu0 0
    %1111 = vmatpush1.bf16.msra.mxu0 0
    %1112 = vmatprep.subr.bf16.mxu0 0
    %1113 = vmatpush1.bf16.msra.mxu0 0
    %1114 = vmatprep.subr.bf16.mxu0 0
    %1115 = vmatpush1.bf16.msra.mxu0 0
    %1116 = vmatprep.subr.bf16.mxu0 0
    %1117 = vmatpush1.bf16.msra.mxu0 0
    %1118 = vmatprep.subr.bf16.mxu0 0
    %1119 = vmatpush1.bf16.msra.mxu0 0
    %1120 = vmatprep.subr.bf16.mxu0 0
    %1121 = vmatpush1.bf16.msra.mxu0 0
    %1122 = vmatprep.subr.bf16.mxu0 0
    %1123 = vmatpush1.bf16.msra.mxu0 0
    %1124 = vmatprep.mubr.bf16.mxu0 0
    %1125 = vmatmul.mubr.bf16.gmra.mrb[0].mxu0 %v325
    %v1126 = vpop.f32.mrb[0].mxu0
    %v1127 = vadd.f32 0.0, %v1126
    %v1128 = vpop.f32.mrb[0].mxu0
    %v1129 = vpop.f32.mrb[0].mxu0
    %v1130 = vadd.f32 0.0, %v1129
    %v1131 = vpop.f32.mrb[0].mxu0
    %1132 = vdwg.mxu0
    %v1133 = vadd.f32 %v1086, %v1127
    %v1134 = vadd.f32 %v1087, %v1130
    %v1135 = vmax.f32 %v1133, 0.0
    %v1136 = vmax.f32 %v1134, 0.0
    %v1137 = vpack.c.bf16 %v1136, %v1135
    %v1138 = vld [vmem:[%s6] sm:$0xff]
    %v1139 = vld [vmem:[%s5] sm:$0xf]
    %v1140 = vld [vmem:[%s5 + $0x4] sm:$0xf]
    %v1141 = vld [vmem:[%s5 + $0x8] sm:$0xf]
    %v1142 = vld [vmem:[%s5 + $0xc] sm:$0xf]
    %v1147 = vunpack.c.l.b16 %v1139
    %v1148 = vunpack.c.l.b16 %v1140
    %v1149 = vunpack.c.l.b16 %v1141
    %v1150 = vunpack.c.l.b16 %v1142
    %v1151 = vpack.c.b16 %v1148, %v1147
    %v1152 = vpack.c.b16 %v1150, %v1149
    %v1156 = vsel %vm174, %v1137, 0
    %1158 = vmatprep.subr.bf16.mxu0 0
    %1159 = vmatpush1.bf16.msra.mxu0 %v1151
    %1160 = vmatprep.subr.bf16.mxu0 0
    %1161 = vmatpush1.bf16.msra.mxu0 %v1152
    %1162 = vmatprep.subr.bf16.mxu0 0
    %1163 = vmatpush1.bf16.msra.mxu0 0
    %1164 = vmatprep.subr.bf16.mxu0 0
    %1165 = vmatpush1.bf16.msra.mxu0 0
    %1166 = vmatprep.subr.bf16.mxu0 0
    %1167 = vmatpush1.bf16.msra.mxu0 0
    %1168 = vmatprep.subr.bf16.mxu0 0
    %1169 = vmatpush1.bf16.msra.mxu0 0
    %1170 = vmatprep.subr.bf16.mxu0 0
    %1171 = vmatpush1.bf16.msra.mxu0 0
    %1172 = vmatprep.subr.bf16.mxu0 0
    %1173 = vmatpush1.bf16.msra.mxu0 0
    %1174 = vmatprep.subr.bf16.mxu0 0
    %1175 = vmatpush1.bf16.msra.mxu0 0
    %1176 = vmatprep.subr.bf16.mxu0 0
    %1177 = vmatpush1.bf16.msra.mxu0 0
    %1178 = vmatprep.subr.bf16.mxu0 0
    %1179 = vmatpush1.bf16.msra.mxu0 0
    %1180 = vmatprep.subr.bf16.mxu0 0
    %1181 = vmatpush1.bf16.msra.mxu0 0
    %1182 = vmatprep.subr.bf16.mxu0 0
    %1183 = vmatpush1.bf16.msra.mxu0 0
    %1184 = vmatprep.subr.bf16.mxu0 0
    %1185 = vmatpush1.bf16.msra.mxu0 0
    %1186 = vmatprep.subr.bf16.mxu0 0
    %1187 = vmatpush1.bf16.msra.mxu0 0
    %1188 = vmatprep.subr.bf16.mxu0 0
    %1189 = vmatpush1.bf16.msra.mxu0 0
    %1190 = vmatprep.mubr.bf16.mxu0 0
    %1191 = vmatmul.mubr.bf16.gmra.mrb[0].mxu0 %v1156
    %v1192 = vpop.f32.mrb[0].mxu0
    %v1193 = vadd.f32 0.0, %v1192
    %v1194 = vpop.f32.mrb[0].mxu0
    %v1195 = vpop.f32.mrb[0].mxu0
    %v1196 = vadd.f32 0.0, %v1195
    %v1197 = vpop.f32.mrb[0].mxu0
    %1198 = vdwg.mxu0
    %v1199 = vlaneseq
    %v1200 = vshrl.u32 %v1199, 7
    %v1201 = vsub.s32 1, %v1200
    %v1202 = vrot.slane %v1138, %v1201
    %v1203 = vmul.f32 %v1193, %v1202
    %v1204 = vmul.f32 %v1196, %v1202
    %1205 = vadd.xlane.f32.xlu0 %v1203
    %v1206 = vpop.xlane.xlu0 %1205
    %1207 = vadd.xlane.f32.xlu0 %v1204
    %v1208 = vpop.xlane.xlu0 %1207
    %1209 = vmatprep.subr.mxu0 0.0
    %1210 = vmatpush1.xpose.msra.mxu0 %v1193
    %1211 = vmatprep.subr.mxu0 0.0
    %1212 = vmatpush1.xpose.msra.mxu0 %v1196
    %1213 = vmatprep.subr.mxu0 0.0
    %1214 = vmatpush1.xpose.msra.mxu0 0.0
    %1215 = vmatprep.subr.mxu0 0.0
    %1216 = vmatpush1.xpose.msra.mxu0 0.0
    %1217 = vmatprep.subr.mxu0 0.0
    %1218 = vmatpush1.xpose.msra.mxu0 0.0
    %1219 = vmatprep.subr.mxu0 0.0
    %1220 = vmatpush1.xpose.msra.mxu0 0.0
    %1221 = vmatprep.subr.mxu0 0.0
    %1222 = vmatpush1.xpose.msra.mxu0 0.0
    %1223 = vmatprep.subr.mxu0 0.0
    %1224 = vmatpush1.xpose.msra.mxu0 0.0
    %1225 = vmatprep.subr.mxu0 0.0
    %1226 = vmatpush1.xpose.msra.mxu0 0.0
    %1227 = vmatprep.subr.mxu0 0.0
    %1228 = vmatpush1.xpose.msra.mxu0 0.0
    %1229 = vmatprep.subr.mxu0 0.0
    %1230 = vmatpush1.xpose.msra.mxu0 0.0
    %1231 = vmatprep.subr.mxu0 0.0
    %1232 = vmatpush1.xpose.msra.mxu0 0.0
    %1233 = vmatprep.subr.mxu0 0.0
    %1234 = vmatpush1.xpose.msra.mxu0 0.0
    %1235 = vmatprep.subr.mxu0 0.0
    %1236 = vmatpush1.xpose.msra.mxu0 0.0
    %1237 = vmatprep.subr.mxu0 0.0
    %1238 = vmatpush1.xpose.msra.mxu0 0.0
    %1239 = vmatprep.subr.mxu0 0.0
    %1240 = vmatpush1.xpose.msra.mxu0 0.0
    %1241 = vmatprep.subr.mxu0 0.0
    %1242 = vmatpush1.xpose.msra.mxu0 0.0
    %1243 = vmatprep.subr.mxu0 0.0
    %1244 = vmatpush1.xpose.msra.mxu0 0.0
    %1245 = vmatprep.subr.mxu0 0.0
    %1246 = vmatpush1.xpose.msra.mxu0 0.0
    %1247 = vmatprep.subr.mxu0 0.0
    %1248 = vmatpush1.xpose.msra.mxu0 0.0
    %1249 = vmatprep.subr.mxu0 0.0
    %1250 = vmatpush1.xpose.msra.mxu0 0.0
    %1251 = vmatprep.subr.mxu0 0.0
    %1252 = vmatpush1.xpose.msra.mxu0 0.0
    %1253 = vmatprep.subr.mxu0 0.0
    %1254 = vmatpush1.xpose.msra.mxu0 0.0
    %1255 = vmatprep.subr.mxu0 0.0
    %1256 = vmatpush1.xpose.msra.mxu0 0.0
    %1257 = vmatprep.subr.mxu0 0.0
    %1258 = vmatpush1.xpose.msra.mxu0 0.0
    %1259 = vmatprep.subr.mxu0 0.0
    %1260 = vmatpush1.xpose.msra.mxu0 0.0
    %1261 = vmatprep.subr.mxu0 0.0
    %1262 = vmatpush1.xpose.msra.mxu0 0.0
    %1263 = vmatprep.subr.mxu0 0.0
    %1264 = vmatpush1.xpose.msra.mxu0 0.0
    %1265 = vmatprep.subr.mxu0 0.0
    %1266 = vmatpush1.xpose.msra.mxu0 0.0
    %1267 = vmatprep.subr.mxu0 0.0
    %1268 = vmatpush1.xpose.msra.mxu0 0.0
    %1269 = vmatprep.subr.mxu0 0.0
    %1270 = vmatpush1.xpose.msra.mxu0 0.0
    %1271 = vmatprep.subr.mxu0 0.0
    %1272 = vmatpush1.xpose.msra.mxu0 0.0
    %1273 = vmatprep.mubr.f32.mxu0 0.0
    %1274 = vmatmul.mubr.f32.gmra.mrb[0].mxu0 %v1138
    %v1275 = vpop.f32.mrb[0].mxu0
    %v1276 = vadd.f32 0.0, %v1275
    %v1277 = vpop.f32.mrb[0].mxu0
    %1278 = vdwg.mxu0
    %v1279 = vlaneseq
    %v1280 = vshrl.u32 %v1279, 7
    %v1281 = vsub.s32 0, %v1280
    %v1282 = vrot.slane %v1276, %v1281
    %v1283 = vadd.f32 %v1206, %v1282
    %v1284 = vadd.f32 %v1208, %v1282
    %vm1285 = vcmp.ge.f32.partialorder %v1283, 0.0
    %vm1286 = vcmp.ge.f32.partialorder %v1284, 0.0
    %v1287 = vmul.f32 %v1283, 0.2
    %v1288 = vmul.f32 %v1284, 0.2
    %v1289 = vsel %vm1285, %v1283, %v1287
    %v1290 = vsel %vm1286, %v1284, %v1288
    %v1291 = vld [vmem:[#allocation8] sm:$0xff]
    %v1292 = vld [vmem:[#allocation8 + $0x8] sm:$0xff]
    %vm1293 = vcmp.gt.f32.partialorder %v1291, 0.0
    %vm1294 = vcmp.gt.f32.partialorder %v1292, 0.0
    %v1295 = vsel %vm1293, %v1289, -1e+30
    %v1296 = vsel %vm1294, %v1290, -1e+30
    %vm1297 = vcmask 130048
    %v1298 = vsel %vm1297, %v1295, -inf
    %1299 = vmax.xlane.f32.xlu0 %v1298
    %v1300 = vpop.xlane.xlu0 %1299
    %v1301 = vsel %vm1297, %v1296, -inf
    %1302 = vmax.xlane.f32.xlu0 %v1301
    %v1303 = vpop.xlane.xlu0 %1302
    %v1304 = vsub.f32 %v1295, %v1300
    %v1305 = vsub.f32 %v1296, %v1303
    %v1306 = vmul.f32 %v1304, 1.442695
    %v1307 = vpow.pop %v1306
    %v1308 = vmul.f32 %v1305, 1.442695
    %v1309 = vpow.pop %v1308
    %v1310 = vmul.f32 %v1291, %v1307
    %v1311 = vmul.f32 %v1292, %v1309
    %v1312 = vsel %vm1293, %v1310, 0.0
    %v1313 = vsel %vm1294, %v1311, 0.0
    %v1314 = vsel %vm1297, %v1312, 0.0
    %1315 = vadd.xlane.f32.xlu0 %v1314
    %v1316 = vpop.xlane.xlu0 %1315
    %v1317 = vsel %vm1297, %v1313, 0.0
    %1318 = vadd.xlane.f32.xlu0 %v1317
    %v1319 = vpop.xlane.xlu0 %1318
    %vm1320 = vcmp.gt.f32.partialorder %v1316, 0.0
    %vm1321 = vcmp.gt.f32.partialorder %v1319, 0.0
    %v1322 = vsel %vm1320, %v1316, 1.0
    %v1323 = vsel %vm1321, %v1319, 1.0
    %v1324 = vrcp.pop %v1322
    %v1325 = vmul.f32 %v1312, %v1324
    %v1326 = vrcp.pop %v1323
    %v1327 = vmul.f32 %v1313, %v1326
    %v1328 = vlaneseq
    %v1329 = vshrl.u32 %v1328, 7
    %v1330 = vsub.s32 2, %v1329
    %v1331 = vrot.slane %v1138, %v1330
    %v1333 = vsel %vm1297, %v1325, 0
    %v1336 = vsel %vm1297, %v1327, 0
    %1338 = vmatprep.subr.mxu0 0.0
    %1339 = vmatpush1.msra.mxu0 %v1193
    %1340 = vmatprep.subr.mxu0 0.0
    %1341 = vmatpush1.msra.mxu0 %v1196
    %1342 = vmatprep.subr.mxu0 0.0
    %1343 = vmatpush1.msra.mxu0 0.0
    %1344 = vmatprep.subr.mxu0 0.0
    %1345 = vmatpush1.msra.mxu0 0.0
    %1346 = vmatprep.subr.mxu0 0.0
    %1347 = vmatpush1.msra.mxu0 0.0
    %1348 = vmatprep.subr.mxu0 0.0
    %1349 = vmatpush1.msra.mxu0 0.0
    %1350 = vmatprep.subr.mxu0 0.0
    %1351 = vmatpush1.msra.mxu0 0.0
    %1352 = vmatprep.subr.mxu0 0.0
    %1353 = vmatpush1.msra.mxu0 0.0
    %1354 = vmatprep.subr.mxu0 0.0
    %1355 = vmatpush1.msra.mxu0 0.0
    %1356 = vmatprep.subr.mxu0 0.0
    %1357 = vmatpush1.msra.mxu0 0.0
    %1358 = vmatprep.subr.mxu0 0.0
    %1359 = vmatpush1.msra.mxu0 0.0
    %1360 = vmatprep.subr.mxu0 0.0
    %1361 = vmatpush1.msra.mxu0 0.0
    %1362 = vmatprep.subr.mxu0 0.0
    %1363 = vmatpush1.msra.mxu0 0.0
    %1364 = vmatprep.subr.mxu0 0.0
    %1365 = vmatpush1.msra.mxu0 0.0
    %1366 = vmatprep.subr.mxu0 0.0
    %1367 = vmatpush1.msra.mxu0 0.0
    %1368 = vmatprep.subr.mxu0 0.0
    %1369 = vmatpush1.msra.mxu0 0.0
    %1370 = vmatprep.subr.mxu0 0.0
    %1371 = vmatpush1.msra.mxu0 0.0
    %1372 = vmatprep.subr.mxu0 0.0
    %1373 = vmatpush1.msra.mxu0 0.0
    %1374 = vmatprep.subr.mxu0 0.0
    %1375 = vmatpush1.msra.mxu0 0.0
    %1376 = vmatprep.subr.mxu0 0.0
    %1377 = vmatpush1.msra.mxu0 0.0
    %1378 = vmatprep.subr.mxu0 0.0
    %1379 = vmatpush1.msra.mxu0 0.0
    %1380 = vmatprep.subr.mxu0 0.0
    %1381 = vmatpush1.msra.mxu0 0.0
    %1382 = vmatprep.subr.mxu0 0.0
    %1383 = vmatpush1.msra.mxu0 0.0
    %1384 = vmatprep.subr.mxu0 0.0
    %1385 = vmatpush1.msra.mxu0 0.0
    %1386 = vmatprep.subr.mxu0 0.0
    %1387 = vmatpush1.msra.mxu0 0.0
    %1388 = vmatprep.subr.mxu0 0.0
    %1389 = vmatpush1.msra.mxu0 0.0
    %1390 = vmatprep.subr.mxu0 0.0
    %1391 = vmatpush1.msra.mxu0 0.0
    %1392 = vmatprep.subr.mxu0 0.0
    %1393 = vmatpush1.msra.mxu0 0.0
    %1394 = vmatprep.subr.mxu0 0.0
    %1395 = vmatpush1.msra.mxu0 0.0
    %1396 = vmatprep.subr.mxu0 0.0
    %1397 = vmatpush1.msra.mxu0 0.0
    %1398 = vmatprep.subr.mxu0 0.0
    %1399 = vmatpush1.msra.mxu0 0.0
    %1400 = vmatprep.subr.mxu0 0.0
    %1401 = vmatpush1.msra.mxu0 0.0
    %1402 = vmatprep.mubr.f32.mxu0 0.0
    %1403 = vmatmul.mubr.f32.gmra.mrb[0].mxu0 %v1333
    %v1404 = vpop.f32.mrb[0].mxu0
    %v1405 = vadd.f32 %v1331, %v1404
    %v1406 = vpop.f32.mrb[0].mxu0
    %1407 = vmatprep.mubr.f32.mxu0 0.0
    %1408 = vmatmul.mubr.f32.gmra.mrb[0].mxu0 %v1336
    %v1409 = vpop.f32.mrb[0].mxu0
    %v1410 = vadd.f32 %v1331, %v1409
    %v1411 = vpop.f32.mrb[0].mxu0
    %1412 = vdwg.mxu0
    %v1413 = vadd.f32 %v1405, %v1410
    %v1414 = vrot.slane %v1413, 4
    %v1415 = vadd.f32 %v1413, %v1414
    %v1416 = vrot.slane %v1415, 2
    %v1417 = vadd.f32 %v1415, %v1416
    %v1418 = vrot.slane %v1417, 1
    %v1419 = vadd.f32 %v1417, %v1418
    %v1420 = vmul.f32 %v1419, %v1138
    %vm1421 = vcmask 1043459
    %v1422 = vsel %vm1421, %v1420, 0.0
    %1423 = vadd.xlane.f32.xlu0 %v1422
    %v1424 = vpop.xlane.xlu0 %1423
    %v1425 = vld [vmem:[#allocation2] sm:$0x1]
    %v1427 = vlaneseq
    %v1428 = vshrl.u32 %v1427, 7
    %v1429 = vsub.s32 0, %v1428
    %v1430 = vrot.slane %v1425, %v1429
    %v1432 = vadd.f32 %v1424, %v1430
    %vm1433 = vcmask 3075
    %1434 = vst.msk [vmem:[#allocation12 - $0x3] sm:$0x8] %vm1433, %v1432
    // Predicated region
    $region54: #{tpu_custom_call.1} parent=1 // pred_check
      _
    $region55: #{tpu_custom_call.1} parent=1 // pred_check_branch
      %1436 = sbr.rel (0) target = $region57
    $region56: #{tpu_custom_call.1} parent=1 // pred_region
      %s1438 = ssub.s32 16, 16
      %1439 = vsyncadd [#allocation5], %s1438
      %s1441 = sshll.u32 [#allocation12], 4
      %s1442 = int_to_ptr.vmem [resolvable:$true] %s1441
      %1444 = dma.vmem_to_hbm [thread:$0]  %s1442, 16, %s8, [#allocation5]
    $region57: #{tpu_custom_call.1} parent=1 // pred_fallthru
      _
    // Predicated region
    $region58: #{tpu_custom_call.1} parent=1 // pred_check
      _
    $region59: #{tpu_custom_call.1} parent=1 // pred_check_branch
      %1446 = sbr.rel (0) target = $region61
    $region60: #{tpu_custom_call.1} parent=1 // pred_region
      %1447 = dma.done [#allocation5], 16
    $region61: #{tpu_custom_call.1} parent=1 // pred_fallthru
      _
    %1448 = vsyncpa [#allocation4], 1
    %1449 = vsyncpa [#allocation7], 1
    %1450 = vsyncpa [#allocation10], 1
    %1451 = vsyncpa [#allocation5], 1

</llo_original>
